<compile_context>
chip_gen: v7x
topology: tpu7x:2x2x1
jax: 0.10.0
libtpu: 0.0.40
codegen_flags: <defaults>
</compile_context>

<pallas_src>
import numpy as np
import jax
import jax.numpy as jnp
from jax.experimental import pallas as pl
from jax.experimental.pallas import tpu as pltpu

# ---- problem sizes (small, consistent with the module's forward) ----------
B = 2            # batch
N = 16           # number of graph nodes
DIM_IN = 4       # input feature dim
DIM_OUT = 32     # output feature dim
CHEB_K = 3       # Chebyshev order
EMBED_DIM = 8    # node-embedding dim
REDUCTION = 16
RED = DIM_OUT // REDUCTION       # SelfAtt hidden width (= 2)
KI = CHEB_K * DIM_IN             # 12 flattened (k, i) groups
BN = B * N                       # 32 row-stacked batch*nodes
LANES = 128
NG = KI + 1                      # 13 groups (12 weight groups + 1 bias group)
GW = NG * EMBED_DIM              # 104 Khatri-Rao lane width

# ---- parameter-slab row offsets (all 8-row aligned) ------------------------
_P_E = 0                          # (16, GW)   zcat-lane -> (f,d) 0/1 expansion
_P_F = 16                         # (8, GW)    ne-lane  -> (f,d) 0/1 expansion
_P_WPOOL = 24                     # (GW, 32)   [wpool_flat ; bias_pool]
_P_WINIT = _P_WPOOL + GW          # 128  (8, 32)  [w_init(4); b_init(1); 0(3)]
_P_GSUP = _P_WINIT + 8            # 136  (K*BN, BN) block-diag static supports
_P_WG = _P_GSUP + CHEB_K * BN     # 232  (96, 32)  gconv weight
_P_BG = _P_WG + CHEB_K * DIM_OUT  # 328  (8, 32)   row 0 = b_gconv
_P_GATE = _P_BG + 8               # 336  (8, 128)  all 4 gate weights
_P_ROWS = _P_GATE + 8             # 344

# ---- per-call slab lane offsets --------------------------------------------
_C_NE = 8                         # lanes 8:16 node embeddings (row-tiled)
_C_L = 16                         # lanes 16:48 block-diag L_tilde_learned

_BLKDIAG_MASK = np.kron(np.eye(B, dtype=np.float32),
                        np.ones((N, N), np.float32))        # (BN, BN)


def _leaky_relu(z):
    return jnp.where(z > 0, z, 0.01 * z)          # F.leaky_relu default slope


def _hardsigmoid(z):
    return jnp.clip(z / 6.0 + 0.5, 0.0, 1.0)      # nn.Hardsigmoid


# ---------------------------------------------------------------------------
# Pallas kernel: single invocation, everything in VMEM.
# ---------------------------------------------------------------------------
def avwgcn_kernel(c_ref, p_ref, o_ref):
    dot = lambda a, b: jnp.dot(a, b, preferred_element_type=jnp.float32)

    # per-call slab (BN, 128): [x(4) | 1 | 0(3) | ne(8) | L_blk(32) | 0...]
    x_aug = c_ref[:, 0:8]                            # (BN, 8)
    x_rows = c_ref[:, 0:DIM_IN]                      # (BN, 4)
    ne_rows = c_ref[:, _C_NE:_C_NE + EMBED_DIM]      # (BN, 8)
    L_blk = c_ref[:, _C_L:_C_L + BN]                 # (BN, BN)

    # parameter slab slices
    E16 = p_ref[_P_E:_P_E + 16, 0:GW]                        # (16, 104)
    F_ne = p_ref[_P_F:_P_F + EMBED_DIM, 0:GW]                # (8, 104)
    wpool_aug = p_ref[_P_WPOOL:_P_WPOOL + GW, 0:DIM_OUT]     # (104, 32)
    w_init_blk = p_ref[_P_WINIT:_P_WINIT + 8, 0:DIM_OUT]     # (8, 32)
    gsup_blk = p_ref[_P_GSUP:_P_GSUP + CHEB_K * BN, 0:BN]    # (96, 32)
    b_gconv = p_ref[_P_BG:_P_BG + 1, 0:DIM_OUT]              # (1, 32)
    g1w1T = p_ref[_P_GATE:_P_GATE + RED, 0:DIM_OUT]          # (2, 32)
    g1w2p = p_ref[_P_GATE:_P_GATE + RED, 32:64]              # (2, 32) lane0=w2
    g2w1T = p_ref[_P_GATE:_P_GATE + RED, 64:96]
    g2w2p = p_ref[_P_GATE:_P_GATE + RED, 96:128]

    # ---- learned Chebyshev recurrence on the row-stacked batch -------------
    # (block-diag L keeps each batch in its own 16-row block; no eye matmul)
    z1 = dot(L_blk, x_rows)                                  # T_1(L) x
    z2 = 2.0 * dot(L_blk, z1) - x_rows                       # T_2(L) x
    zcat = jnp.concatenate([x_aug, z1, z2], axis=1)          # (BN, 16)

    # ---- adaptive branch: Khatri-Rao product, ONE conv matmul --------------
    # zrep[bn, f*8+d] = z_f[bn];  nerep[bn, f*8+d] = ne[n, d]
    zrep = dot(zcat, E16)                                    # (BN, 104)
    nerep = dot(ne_rows, F_ne)                               # (BN, 104)
    out0 = dot(zrep * nerep, wpool_aug)                      # (BN, 32) + adaptive bias

    # ---- static branch: init_gconv (bias folded) + fused supports ----------
    x1 = dot(x_aug, w_init_blk)                              # (BN, 32)
    gk = dot(gsup_blk, x1)                                   # (K*BN, 32)
    acc1 = b_gconv
    for k in range(CHEB_K):
        acc1 = acc1 + dot(
            gk[k * BN:(k + 1) * BN, :],
            p_ref[_P_WG + k * DIM_OUT:_P_WG + (k + 1) * DIM_OUT, 0:DIM_OUT])

    lr0 = _leaky_relu(out0)
    lr1 = _leaky_relu(acc1)

    # ---- per-batch SelfAtt gates on VPU/XLU (no MXU in the epilogue) -------
    for b in range(B):
        r0, r1 = b * N, (b + 1) * N
        y0 = jnp.mean(lr0[r0:r1, :], axis=0, keepdims=True)                  # (1, 32)
        h0 = jnp.maximum(jnp.sum(y0 * g1w1T, axis=-1, keepdims=True), 0.0)   # (2, 1)
        s0 = _hardsigmoid(jnp.sum(h0 * g1w2p, keepdims=True))                # (1, 1)

        y1 = jnp.mean(lr1[r0:r1, :], axis=0, keepdims=True)
        h1 = jnp.maximum(jnp.sum(y1 * g2w1T, axis=-1, keepdims=True), 0.0)
        s1 = _hardsigmoid(jnp.sum(h1 * g2w2p, keepdims=True))

        o_ref[r0:r1, :] = lr0[r0:r1, :] * s0 + lr1[r0:r1, :] * s1


# ---------------------------------------------------------------------------
# One-time parameter packing (host-side numpy; NOT in the per-call path).
# ---------------------------------------------------------------------------
def _pack_params(graph_supports, params):
    f32 = np.float32
    gs = np.asarray(graph_supports, f32)                     # (K, N, N)

    def lanepad(a):
        a = np.asarray(a, f32)
        out = np.zeros((a.shape[0], LANES), f32)
        out[:, :a.shape[1]] = a
        return out

    # zcat lanes: [x(0:4) | 1(4) | 0(5:8) | z1(8:12) | z2(12:16)]
    # groups: f = k*DIM_IN + i for f < 12; f = 12 is the adaptive-bias slot.
    E16 = np.zeros((16, GW), f32)
    lane_to_f = {}
    for i in range(DIM_IN):
        lane_to_f[i] = i
        lane_to_f[8 + i] = DIM_IN + i
        lane_to_f[12 + i] = 2 * DIM_IN + i
    lane_to_f[DIM_IN] = KI                                   # ones lane -> bias group
    for l, f in lane_to_f.items():
        E16[l, f * EMBED_DIM:(f + 1) * EMBED_DIM] = 1.0

    F = np.zeros((EMBED_DIM, GW), f32)
    for f in range(NG):
        F[np.arange(EMBED_DIM), f * EMBED_DIM + np.arange(EMBED_DIM)] = 1.0

    wpool = np.asarray(params["weights_pool"], f32)          # (E, K, I, O)
    wpool_flat = np.transpose(wpool, (1, 2, 0, 3)).reshape(KI * EMBED_DIM, DIM_OUT)
    wpool_aug = np.concatenate(
        [wpool_flat, np.asarray(params["bias_pool"], f32)], axis=0)   # (104, 32)

    w_init_blk = np.zeros((8, DIM_OUT), f32)
    w_init_blk[:DIM_IN] = np.asarray(params["w_init"], f32)
    w_init_blk[DIM_IN] = np.asarray(params["b_init"], f32).reshape(DIM_OUT)

    gsup_blk = np.zeros((CHEB_K * BN, BN), f32)              # per-k block-diag supports
    for k in range(CHEB_K):
        for b in range(B):
            gsup_blk[k * BN + b * N:k * BN + (b + 1) * N, b * N:(b + 1) * N] = gs[k]

    b_gconv_blk = np.zeros((8, DIM_OUT), f32)
    b_gconv_blk[0] = np.asarray(params["b_gconv"], f32).reshape(DIM_OUT)

    gate_blk = np.zeros((8, LANES), f32)
    gate_blk[:RED, 0:DIM_OUT] = np.asarray(params["g1w1"], f32).T
    gate_blk[:RED, 32:33] = np.asarray(params["g1w2"], f32)
    gate_blk[:RED, 64:64 + DIM_OUT] = np.asarray(params["g2w1"], f32).T
    gate_blk[:RED, 96:97] = np.asarray(params["g2w2"], f32)

    slab = np.concatenate(
        [lanepad(E16), lanepad(F), lanepad(wpool_aug), lanepad(w_init_blk),
         lanepad(gsup_blk), lanepad(np.asarray(params["w_gconv"], f32)),
         lanepad(b_gconv_blk), gate_blk], axis=0)
    assert slab.shape == (_P_ROWS, LANES)
    return jnp.asarray(slab)


def _vmem_spec():
    return pl.BlockSpec(memory_space=pltpu.MemorySpace.VMEM)


def make_avwgcn_forward(graph_supports, params):
    """Pre-packs parameters once; returns a jitted forward(x, ne, L)."""
    param_slab = _pack_params(graph_supports, params)        # (344, 128)

    @jax.jit
    def forward(x, node_embeddings, L_tilde_learned):
        f32 = jnp.float32
        x2d = x.reshape(BN, DIM_IN).astype(f32)                         # (32, 4)
        ne_rows = jnp.tile(node_embeddings.astype(f32), (B, 1))         # (32, 8)
        L_blk = (jnp.tile(L_tilde_learned.astype(f32), (B, B))
                 * _BLKDIAG_MASK)                                       # (32, 32)
        call_slab = jnp.concatenate(
            [x2d,
             jnp.ones((BN, 1), f32),
             jnp.zeros((BN, 3), f32),
             ne_rows,
             L_blk,
             jnp.zeros((BN, LANES - (_C_L + BN)), f32)], axis=1)        # (32, 128)

        out2d = pl.pallas_call(
            avwgcn_kernel,
            out_shape=jax.ShapeDtypeStruct((BN, DIM_OUT), f32),
            in_specs=[_vmem_spec(), _vmem_spec()],
            out_specs=_vmem_spec(),
        )(call_slab, param_slab)
        return out2d.reshape(B, N, DIM_OUT)

    return forward


# ---------------------------------------------------------------------------
# Pure-JAX reference mirroring the PyTorch forward (for correctness check).
# ---------------------------------------------------------------------------
def avwgcn_reference(x, ne, L, graph_supports, p):
    n = ne.shape[0]
    support_set = [jnp.eye(n, dtype=jnp.float32), L]
    for _ in range(2, CHEB_K):
        support_set.append(2.0 * L @ support_set[-1] - support_set[-2])
    supports = jnp.stack(support_set, 0)

    weights = jnp.einsum('nd,dkio->nkio', ne, p["weights_pool"])
    bias = ne @ p["bias_pool"]
    x_g = jnp.einsum('knm,bmc->bknc', supports, x).transpose(0, 2, 1, 3)
    x_gconv0 = jnp.einsum('bnki,nkio->bno', x_g, weights) + bias

    x1 = x @ p["w_init"] + p["b_init"]
    x_g1 = jnp.einsum('knm,bmc->bknc', graph_supports, x1)
    x_g1 = x_g1.transpose(0, 2, 1, 3).reshape(x.shape[0], n, -1)
    x_gconv1 = x_g1 @ p["w_gconv"] + p["b_gconv"]

    def self_att(z, w1, w2):            # z: (B, C, L) like the PyTorch SelfAtt
        y = z.mean(axis=-1)
        y = jnp.maximum(y @ w1, 0.0) @ w2
        y = jnp.clip(y / 6.0 + 0.5, 0.0, 1.0)
        return z * y[:, :, None]

    g1 = self_att(_leaky_relu(x_gconv0).transpose(0, 2, 1), p["g1w1"], p["g1w2"])
    g2 = self_att(_leaky_relu(x_gconv1).transpose(0, 2, 1), p["g2w1"], p["g2w2"])
    return (g1 + g2).transpose(0, 2, 1)


if __name__ == "__main__":
    key = jax.random.PRNGKey(0)
    ks = jax.random.split(key, 16)

    # inputs
    x = jax.random.normal(ks[0], (B, N, DIM_IN), jnp.float32)
    node_embeddings = jax.random.normal(ks[1], (N, EMBED_DIM), jnp.float32) * 0.5
    L_raw = jax.random.normal(ks[2], (N, N), jnp.float32) * 0.2
    L_tilde_learned = 0.5 * (L_raw + L_raw.T)

    # static cheb_polynomials built from a deterministic L_tilde
    Lt_raw = jax.random.normal(ks[3], (N, N), jnp.float32) * 0.2
    L_tilde = 0.5 * (Lt_raw + Lt_raw.T)
    cheb = [jnp.eye(N, dtype=jnp.float32), L_tilde]
    for _ in range(2, CHEB_K):
        cheb.append(2.0 * L_tilde @ cheb[-1] - cheb[-2])
    graph_supports = jnp.stack(cheb, 0)

    # deterministic parameters (shapes as declared in AVWGCN.__init__)
    params = {
        "weights_pool": jax.random.normal(ks[4], (EMBED_DIM, CHEB_K, DIM_IN, DIM_OUT), jnp.float32) * 0.1,
        "bias_pool":    jax.random.normal(ks[5], (EMBED_DIM, DIM_OUT), jnp.float32) * 0.1,
        "w_init":       jax.random.normal(ks[6], (DIM_IN, DIM_OUT), jnp.float32) * 0.1,
        "b_init":       jax.random.normal(ks[7], (1, DIM_OUT), jnp.float32) * 0.1,
        "w_gconv":      jax.random.normal(ks[8], (CHEB_K * DIM_OUT, DIM_OUT), jnp.float32) * 0.1,
        "b_gconv":      jax.random.normal(ks[9], (1, DIM_OUT), jnp.float32) * 0.1,
        "g1w1":         jax.random.normal(ks[10], (DIM_OUT, RED), jnp.float32) * 0.1,
        "g1w2":         jax.random.normal(ks[11], (RED, 1), jnp.float32) * 0.1,
        "g2w1":         jax.random.normal(ks[12], (DIM_OUT, RED), jnp.float32) * 0.1,
        "g2w2":         jax.random.normal(ks[13], (RED, 1), jnp.float32) * 0.1,
    }

    forward = make_avwgcn_forward(graph_supports, params)   # params packed once here
    out = jax.block_until_ready(forward(x, node_embeddings, L_tilde_learned))

    ref = avwgcn_reference(x, node_embeddings, L_tilde_learned, graph_supports, params)
    assert out.shape == (B, N, DIM_OUT)
    assert jnp.allclose(out, ref, rtol=2e-3, atol=2e-3), \
        f"max err {jnp.max(jnp.abs(out - ref))}"

    print("KERNEL_OK")
</pallas_src>

<mosaic_0001>
module attributes {stable_mosaic.version = 11 : i64} {
  func.func @avwgcn_kernel(%arg0: memref<32x128xf32, #tpu.memory_space<vmem>>, %arg1: memref<344x128xf32, #tpu.memory_space<vmem>>, %arg2: memref<32x32xf32, #tpu.memory_space<vmem>>) attributes {dimension_semantics = [], scalar_prefetch = 0 : i64, scratch_operands = 0 : i64, tpu.core_type = #tpu.core_type<tc>} {
    %c0 = arith.constant 0 : index
    %c0_0 = arith.constant 0 : index
    %0 = vector.load %arg0[%c0, %c0_0] : memref<32x128xf32, #tpu.memory_space<vmem>>, vector<32x8xf32>
    %c0_1 = arith.constant 0 : index
    %c0_2 = arith.constant 0 : index
    %1 = vector.load %arg0[%c0_1, %c0_2] : memref<32x128xf32, #tpu.memory_space<vmem>>, vector<32x4xf32>
    %c0_3 = arith.constant 0 : index
    %c8 = arith.constant 8 : index
    %2 = vector.load %arg0[%c0_3, %c8] : memref<32x128xf32, #tpu.memory_space<vmem>>, vector<32x8xf32>
    %c0_4 = arith.constant 0 : index
    %c16 = arith.constant 16 : index
    %3 = vector.load %arg0[%c0_4, %c16] : memref<32x128xf32, #tpu.memory_space<vmem>>, vector<32x32xf32>
    %c0_5 = arith.constant 0 : index
    %c0_6 = arith.constant 0 : index
    %4 = vector.load %arg1[%c0_5, %c0_6] : memref<344x128xf32, #tpu.memory_space<vmem>>, vector<16x104xf32>
    %c16_7 = arith.constant 16 : index
    %c0_8 = arith.constant 0 : index
    %5 = vector.load %arg1[%c16_7, %c0_8] : memref<344x128xf32, #tpu.memory_space<vmem>>, vector<8x104xf32>
    %c24 = arith.constant 24 : index
    %c0_9 = arith.constant 0 : index
    %6 = vector.load %arg1[%c24, %c0_9] : memref<344x128xf32, #tpu.memory_space<vmem>>, vector<104x32xf32>
    %c128 = arith.constant 128 : index
    %c0_10 = arith.constant 0 : index
    %7 = vector.load %arg1[%c128, %c0_10] : memref<344x128xf32, #tpu.memory_space<vmem>>, vector<8x32xf32>
    %c136 = arith.constant 136 : index
    %c0_11 = arith.constant 0 : index
    %8 = vector.load %arg1[%c136, %c0_11] : memref<344x128xf32, #tpu.memory_space<vmem>>, vector<96x32xf32>
    %c328 = arith.constant 328 : index
    %c0_12 = arith.constant 0 : index
    %9 = vector.load %arg1[%c328, %c0_12] : memref<344x128xf32, #tpu.memory_space<vmem>>, vector<1x32xf32>
    %c336 = arith.constant 336 : index
    %c0_13 = arith.constant 0 : index
    %10 = vector.load %arg1[%c336, %c0_13] : memref<344x128xf32, #tpu.memory_space<vmem>>, vector<2x32xf32>
    %c336_14 = arith.constant 336 : index
    %c32 = arith.constant 32 : index
    %11 = vector.load %arg1[%c336_14, %c32] : memref<344x128xf32, #tpu.memory_space<vmem>>, vector<2x32xf32>
    %c336_15 = arith.constant 336 : index
    %c64 = arith.constant 64 : index
    %12 = vector.load %arg1[%c336_15, %c64] : memref<344x128xf32, #tpu.memory_space<vmem>>, vector<2x32xf32>
    %c336_16 = arith.constant 336 : index
    %c96 = arith.constant 96 : index
    %13 = vector.load %arg1[%c336_16, %c96] : memref<344x128xf32, #tpu.memory_space<vmem>>, vector<2x32xf32>
    %cst = arith.constant dense<0.000000e+00> : vector<32x4xf32>
    %14 = tpu.matmul %3, %1, %cst {dimension_numbers = #tpu.dot_dimension_numbers<[1], [0], [0], [1], [0, 0, 1, 1], [], []>} : vector<32x32xf32>, vector<32x4xf32>, vector<32x4xf32> -> vector<32x4xf32>
    %cst_17 = arith.constant dense<0.000000e+00> : vector<32x4xf32>
    %15 = tpu.matmul %3, %14, %cst_17 {dimension_numbers = #tpu.dot_dimension_numbers<[1], [0], [0], [1], [0, 0, 1, 1], [], []>} : vector<32x32xf32>, vector<32x4xf32>, vector<32x4xf32> -> vector<32x4xf32>
    %cst_18 = arith.constant 2.000000e+00 : f32
    %16 = vector.broadcast %cst_18 : f32 to vector<32x4xf32>
    %17 = arith.mulf %16, %15 : vector<32x4xf32>
    %18 = arith.subf %17, %1 : vector<32x4xf32>
    %19 = tpu.concatenate %0, %14, %18 in 1 : vector<32x8xf32>, vector<32x4xf32>, vector<32x4xf32> -> vector<32x16xf32>
    %cst_19 = arith.constant dense<0.000000e+00> : vector<32x104xf32>
    %20 = tpu.matmul %19, %4, %cst_19 {dimension_numbers = #tpu.dot_dimension_numbers<[1], [0], [0], [1], [0, 0, 1, 1], [], []>} : vector<32x16xf32>, vector<16x104xf32>, vector<32x104xf32> -> vector<32x104xf32>
    %cst_20 = arith.constant dense<0.000000e+00> : vector<32x104xf32>
    %21 = tpu.matmul %2, %5, %cst_20 {dimension_numbers = #tpu.dot_dimension_numbers<[1], [0], [0], [1], [0, 0, 1, 1], [], []>} : vector<32x8xf32>, vector<8x104xf32>, vector<32x104xf32> -> vector<32x104xf32>
    %22 = arith.mulf %20, %21 : vector<32x104xf32>
    %cst_21 = arith.constant dense<0.000000e+00> : vector<32x32xf32>
    %23 = tpu.matmul %22, %6, %cst_21 {dimension_numbers = #tpu.dot_dimension_numbers<[1], [0], [0], [1], [0, 0, 1, 1], [], []>} : vector<32x104xf32>, vector<104x32xf32>, vector<32x32xf32> -> vector<32x32xf32>
    %cst_22 = arith.constant dense<0.000000e+00> : vector<32x32xf32>
    %24 = tpu.matmul %0, %7, %cst_22 {dimension_numbers = #tpu.dot_dimension_numbers<[1], [0], [0], [1], [0, 0, 1, 1], [], []>} : vector<32x8xf32>, vector<8x32xf32>, vector<32x32xf32> -> vector<32x32xf32>
    %cst_23 = arith.constant dense<0.000000e+00> : vector<96x32xf32>
    %25 = tpu.matmul %8, %24, %cst_23 {dimension_numbers = #tpu.dot_dimension_numbers<[1], [0], [0], [1], [0, 0, 1, 1], [], []>} : vector<96x32xf32>, vector<32x32xf32>, vector<96x32xf32> -> vector<96x32xf32>
    %26 = vector.extract_strided_slice %25 {offsets = [0, 0], sizes = [32, 32], strides = [1, 1]} : vector<96x32xf32> to vector<32x32xf32>
    %c232 = arith.constant 232 : index
    %c0_24 = arith.constant 0 : index
    %27 = vector.load %arg1[%c232, %c0_24] : memref<344x128xf32, #tpu.memory_space<vmem>>, vector<32x32xf32>
    %cst_25 = arith.constant dense<0.000000e+00> : vector<32x32xf32>
    %28 = tpu.matmul %26, %27, %cst_25 {dimension_numbers = #tpu.dot_dimension_numbers<[1], [0], [0], [1], [0, 0, 1, 1], [], []>} : vector<32x32xf32>, vector<32x32xf32>, vector<32x32xf32> -> vector<32x32xf32>
    %29 = vector.broadcast %9 : vector<1x32xf32> to vector<32x32xf32>
    %30 = arith.addf %29, %28 : vector<32x32xf32>
    %31 = vector.extract_strided_slice %25 {offsets = [32, 0], sizes = [32, 32], strides = [1, 1]} : vector<96x32xf32> to vector<32x32xf32>
    %c264 = arith.constant 264 : index
    %c0_26 = arith.constant 0 : index
    %32 = vector.load %arg1[%c264, %c0_26] : memref<344x128xf32, #tpu.memory_space<vmem>>, vector<32x32xf32>
    %cst_27 = arith.constant dense<0.000000e+00> : vector<32x32xf32>
    %33 = tpu.matmul %31, %32, %cst_27 {dimension_numbers = #tpu.dot_dimension_numbers<[1], [0], [0], [1], [0, 0, 1, 1], [], []>} : vector<32x32xf32>, vector<32x32xf32>, vector<32x32xf32> -> vector<32x32xf32>
    %34 = arith.addf %30, %33 : vector<32x32xf32>
    %35 = vector.extract_strided_slice %25 {offsets = [64, 0], sizes = [32, 32], strides = [1, 1]} : vector<96x32xf32> to vector<32x32xf32>
    %c296 = arith.constant 296 : index
    %c0_28 = arith.constant 0 : index
    %36 = vector.load %arg1[%c296, %c0_28] : memref<344x128xf32, #tpu.memory_space<vmem>>, vector<32x32xf32>
    %cst_29 = arith.constant dense<0.000000e+00> : vector<32x32xf32>
    %37 = tpu.matmul %35, %36, %cst_29 {dimension_numbers = #tpu.dot_dimension_numbers<[1], [0], [0], [1], [0, 0, 1, 1], [], []>} : vector<32x32xf32>, vector<32x32xf32>, vector<32x32xf32> -> vector<32x32xf32>
    %38 = arith.addf %34, %37 : vector<32x32xf32>
    %cst_30 = arith.constant 0.000000e+00 : f32
    %39 = vector.broadcast %cst_30 : f32 to vector<32x32xf32>
    %40 = arith.cmpf ogt, %23, %39 : vector<32x32xf32>
    %cst_31 = arith.constant 0.00999999977 : f32
    %41 = vector.broadcast %cst_31 : f32 to vector<32x32xf32>
    %42 = arith.mulf %41, %23 : vector<32x32xf32>
    %43 = arith.select %40, %23, %42 : vector<32x32xi1>, vector<32x32xf32>
    %cst_32 = arith.constant 0.000000e+00 : f32
    %44 = vector.broadcast %cst_32 : f32 to vector<32x32xf32>
    %45 = arith.cmpf ogt, %38, %44 : vector<32x32xf32>
    %cst_33 = arith.constant 0.00999999977 : f32
    %46 = vector.broadcast %cst_33 : f32 to vector<32x32xf32>
    %47 = arith.mulf %46, %38 : vector<32x32xf32>
    %48 = arith.select %45, %38, %47 : vector<32x32xi1>, vector<32x32xf32>
    %49 = vector.extract_strided_slice %43 {offsets = [0, 0], sizes = [16, 32], strides = [1, 1]} : vector<32x32xf32> to vector<16x32xf32>
    %cst_34 = arith.constant dense<0.000000e+00> : vector<32xf32>
    %50 = vector.multi_reduction <add>, %49, %cst_34 [0] : vector<16x32xf32> to vector<32xf32>
    %51 = vector.shape_cast %50 : vector<32xf32> to vector<1x32xf32>
    %cst_35 = arith.constant 1.600000e+01 : f32
    %52 = vector.broadcast %cst_35 : f32 to vector<1x32xf32>
    %53 = arith.divf %51, %52 : vector<1x32xf32>
    %54 = vector.broadcast %53 : vector<1x32xf32> to vector<2x32xf32>
    %55 = arith.mulf %54, %10 : vector<2x32xf32>
    %cst_36 = arith.constant dense<0.000000e+00> : vector<2xf32>
    %56 = vector.multi_reduction <add>, %55, %cst_36 [1] : vector<2x32xf32> to vector<2xf32>
    %57 = vector.shape_cast %56 : vector<2xf32> to vector<2x1xf32>
    %cst_37 = arith.constant 0.000000e+00 : f32
    %58 = vector.broadcast %cst_37 : f32 to vector<2x1xf32>
    %59 = arith.maximumf %57, %58 : vector<2x1xf32>
    %60 = vector.broadcast %59 : vector<2x1xf32> to vector<2x32xf32>
    %61 = arith.mulf %60, %11 : vector<2x32xf32>
    %62 = vector.shape_cast %61 : vector<2x32xf32> to vector<1x2x32xf32>
    %cst_38 = arith.constant dense<0.000000e+00> : vector<1xf32>
    %63 = vector.multi_reduction <add>, %62, %cst_38 [1, 2] : vector<1x2x32xf32> to vector<1xf32>
    %64 = vector.shape_cast %63 : vector<1xf32> to vector<1x1x1xf32>
    %65 = vector.extract %64[0, 0, 0] : f32 from vector<1x1x1xf32>
    %66 = vector.broadcast %65 : f32 to vector<1x1xf32>
    %cst_39 = arith.constant 6.000000e+00 : f32
    %67 = vector.broadcast %cst_39 : f32 to vector<1x1xf32>
    %68 = arith.divf %66, %67 : vector<1x1xf32>
    %cst_40 = arith.constant 5.000000e-01 : f32
    %69 = vector.broadcast %cst_40 : f32 to vector<1x1xf32>
    %70 = arith.addf %68, %69 : vector<1x1xf32>
    %cst_41 = arith.constant 0.000000e+00 : f32
    %cst_42 = arith.constant 1.000000e+00 : f32
    %71 = vector.broadcast %cst_41 : f32 to vector<1x1xf32>
    %72 = arith.maximumf %71, %70 : vector<1x1xf32>
    %73 = vector.broadcast %cst_42 : f32 to vector<1x1xf32>
    %74 = arith.minimumf %73, %72 : vector<1x1xf32>
    %75 = vector.extract_strided_slice %48 {offsets = [0, 0], sizes = [16, 32], strides = [1, 1]} : vector<32x32xf32> to vector<16x32xf32>
    %cst_43 = arith.constant dense<0.000000e+00> : vector<32xf32>
    %76 = vector.multi_reduction <add>, %75, %cst_43 [0] : vector<16x32xf32> to vector<32xf32>
    %77 = vector.shape_cast %76 : vector<32xf32> to vector<1x32xf32>
    %cst_44 = arith.constant 1.600000e+01 : f32
    %78 = vector.broadcast %cst_44 : f32 to vector<1x32xf32>
    %79 = arith.divf %77, %78 : vector<1x32xf32>
    %80 = vector.broadcast %79 : vector<1x32xf32> to vector<2x32xf32>
    %81 = arith.mulf %80, %12 : vector<2x32xf32>
    %cst_45 = arith.constant dense<0.000000e+00> : vector<2xf32>
    %82 = vector.multi_reduction <add>, %81, %cst_45 [1] : vector<2x32xf32> to vector<2xf32>
    %83 = vector.shape_cast %82 : vector<2xf32> to vector<2x1xf32>
    %cst_46 = arith.constant 0.000000e+00 : f32
    %84 = vector.broadcast %cst_46 : f32 to vector<2x1xf32>
    %85 = arith.maximumf %83, %84 : vector<2x1xf32>
    %86 = vector.broadcast %85 : vector<2x1xf32> to vector<2x32xf32>
    %87 = arith.mulf %86, %13 : vector<2x32xf32>
    %88 = vector.shape_cast %87 : vector<2x32xf32> to vector<1x2x32xf32>
    %cst_47 = arith.constant dense<0.000000e+00> : vector<1xf32>
    %89 = vector.multi_reduction <add>, %88, %cst_47 [1, 2] : vector<1x2x32xf32> to vector<1xf32>
    %90 = vector.shape_cast %89 : vector<1xf32> to vector<1x1x1xf32>
    %91 = vector.extract %90[0, 0, 0] : f32 from vector<1x1x1xf32>
    %92 = vector.broadcast %91 : f32 to vector<1x1xf32>
    %cst_48 = arith.constant 6.000000e+00 : f32
    %93 = vector.broadcast %cst_48 : f32 to vector<1x1xf32>
    %94 = arith.divf %92, %93 : vector<1x1xf32>
    %cst_49 = arith.constant 5.000000e-01 : f32
    %95 = vector.broadcast %cst_49 : f32 to vector<1x1xf32>
    %96 = arith.addf %94, %95 : vector<1x1xf32>
    %cst_50 = arith.constant 0.000000e+00 : f32
    %cst_51 = arith.constant 1.000000e+00 : f32
    %97 = vector.broadcast %cst_50 : f32 to vector<1x1xf32>
    %98 = arith.maximumf %97, %96 : vector<1x1xf32>
    %99 = vector.broadcast %cst_51 : f32 to vector<1x1xf32>
    %100 = arith.minimumf %99, %98 : vector<1x1xf32>
    %101 = vector.extract_strided_slice %43 {offsets = [0, 0], sizes = [16, 32], strides = [1, 1]} : vector<32x32xf32> to vector<16x32xf32>
    %102 = vector.broadcast %74 : vector<1x1xf32> to vector<16x32xf32>
    %103 = arith.mulf %101, %102 : vector<16x32xf32>
    %104 = vector.extract_strided_slice %48 {offsets = [0, 0], sizes = [16, 32], strides = [1, 1]} : vector<32x32xf32> to vector<16x32xf32>
    %105 = vector.broadcast %100 : vector<1x1xf32> to vector<16x32xf32>
    %106 = arith.mulf %104, %105 : vector<16x32xf32>
    %107 = arith.addf %103, %106 : vector<16x32xf32>
    %c0_52 = arith.constant 0 : index
    %c0_53 = arith.constant 0 : index
    %108 = vector.load %arg2[%c0_52, %c0_53] : memref<32x32xf32, #tpu.memory_space<vmem>>, vector<16x32xf32>
    tpu.vector_store %arg2[%c0_52, %c0_53], %107 {strides = array<i32>} : memref<32x32xf32, #tpu.memory_space<vmem>>, vector<16x32xf32>,
    %109 = vector.extract_strided_slice %43 {offsets = [16, 0], sizes = [16, 32], strides = [1, 1]} : vector<32x32xf32> to vector<16x32xf32>
    %cst_54 = arith.constant dense<0.000000e+00> : vector<32xf32>
    %110 = vector.multi_reduction <add>, %109, %cst_54 [0] : vector<16x32xf32> to vector<32xf32>
    %111 = vector.shape_cast %110 : vector<32xf32> to vector<1x32xf32>
    %cst_55 = arith.constant 1.600000e+01 : f32
    %112 = vector.broadcast %cst_55 : f32 to vector<1x32xf32>
    %113 = arith.divf %111, %112 : vector<1x32xf32>
    %114 = vector.broadcast %113 : vector<1x32xf32> to vector<2x32xf32>
    %115 = arith.mulf %114, %10 : vector<2x32xf32>
    %cst_56 = arith.constant dense<0.000000e+00> : vector<2xf32>
    %116 = vector.multi_reduction <add>, %115, %cst_56 [1] : vector<2x32xf32> to vector<2xf32>
    %117 = vector.shape_cast %116 : vector<2xf32> to vector<2x1xf32>
    %cst_57 = arith.constant 0.000000e+00 : f32
    %118 = vector.broadcast %cst_57 : f32 to vector<2x1xf32>
    %119 = arith.maximumf %117, %118 : vector<2x1xf32>
    %120 = vector.broadcast %119 : vector<2x1xf32> to vector<2x32xf32>
    %121 = arith.mulf %120, %11 : vector<2x32xf32>
    %122 = vector.shape_cast %121 : vector<2x32xf32> to vector<1x2x32xf32>
    %cst_58 = arith.constant dense<0.000000e+00> : vector<1xf32>
    %123 = vector.multi_reduction <add>, %122, %cst_58 [1, 2] : vector<1x2x32xf32> to vector<1xf32>
    %124 = vector.shape_cast %123 : vector<1xf32> to vector<1x1x1xf32>
    %125 = vector.extract %124[0, 0, 0] : f32 from vector<1x1x1xf32>
    %126 = vector.broadcast %125 : f32 to vector<1x1xf32>
    %cst_59 = arith.constant 6.000000e+00 : f32
    %127 = vector.broadcast %cst_59 : f32 to vector<1x1xf32>
    %128 = arith.divf %126, %127 : vector<1x1xf32>
    %cst_60 = arith.constant 5.000000e-01 : f32
    %129 = vector.broadcast %cst_60 : f32 to vector<1x1xf32>
    %130 = arith.addf %128, %129 : vector<1x1xf32>
    %cst_61 = arith.constant 0.000000e+00 : f32
    %cst_62 = arith.constant 1.000000e+00 : f32
    %131 = vector.broadcast %cst_61 : f32 to vector<1x1xf32>
    %132 = arith.maximumf %131, %130 : vector<1x1xf32>
    %133 = vector.broadcast %cst_62 : f32 to vector<1x1xf32>
    %134 = arith.minimumf %133, %132 : vector<1x1xf32>
    %135 = vector.extract_strided_slice %48 {offsets = [16, 0], sizes = [16, 32], strides = [1, 1]} : vector<32x32xf32> to vector<16x32xf32>
    %cst_63 = arith.constant dense<0.000000e+00> : vector<32xf32>
    %136 = vector.multi_reduction <add>, %135, %cst_63 [0] : vector<16x32xf32> to vector<32xf32>
    %137 = vector.shape_cast %136 : vector<32xf32> to vector<1x32xf32>
    %cst_64 = arith.constant 1.600000e+01 : f32
    %138 = vector.broadcast %cst_64 : f32 to vector<1x32xf32>
    %139 = arith.divf %137, %138 : vector<1x32xf32>
    %140 = vector.broadcast %139 : vector<1x32xf32> to vector<2x32xf32>
    %141 = arith.mulf %140, %12 : vector<2x32xf32>
    %cst_65 = arith.constant dense<0.000000e+00> : vector<2xf32>
    %142 = vector.multi_reduction <add>, %141, %cst_65 [1] : vector<2x32xf32> to vector<2xf32>
    %143 = vector.shape_cast %142 : vector<2xf32> to vector<2x1xf32>
    %cst_66 = arith.constant 0.000000e+00 : f32
    %144 = vector.broadcast %cst_66 : f32 to vector<2x1xf32>
    %145 = arith.maximumf %143, %144 : vector<2x1xf32>
    %146 = vector.broadcast %145 : vector<2x1xf32> to vector<2x32xf32>
    %147 = arith.mulf %146, %13 : vector<2x32xf32>
    %148 = vector.shape_cast %147 : vector<2x32xf32> to vector<1x2x32xf32>
    %cst_67 = arith.constant dense<0.000000e+00> : vector<1xf32>
    %149 = vector.multi_reduction <add>, %148, %cst_67 [1, 2] : vector<1x2x32xf32> to vector<1xf32>
    %150 = vector.shape_cast %149 : vector<1xf32> to vector<1x1x1xf32>
    %151 = vector.extract %150[0, 0, 0] : f32 from vector<1x1x1xf32>
    %152 = vector.broadcast %151 : f32 to vector<1x1xf32>
    %cst_68 = arith.constant 6.000000e+00 : f32
    %153 = vector.broadcast %cst_68 : f32 to vector<1x1xf32>
    %154 = arith.divf %152, %153 : vector<1x1xf32>
    %cst_69 = arith.constant 5.000000e-01 : f32
    %155 = vector.broadcast %cst_69 : f32 to vector<1x1xf32>
    %156 = arith.addf %154, %155 : vector<1x1xf32>
    %cst_70 = arith.constant 0.000000e+00 : f32
    %cst_71 = arith.constant 1.000000e+00 : f32
    %157 = vector.broadcast %cst_70 : f32 to vector<1x1xf32>
    %158 = arith.maximumf %157, %156 : vector<1x1xf32>
    %159 = vector.broadcast %cst_71 : f32 to vector<1x1xf32>
    %160 = arith.minimumf %159, %158 : vector<1x1xf32>
    %161 = vector.extract_strided_slice %43 {offsets = [16, 0], sizes = [16, 32], strides = [1, 1]} : vector<32x32xf32> to vector<16x32xf32>
    %162 = vector.broadcast %134 : vector<1x1xf32> to vector<16x32xf32>
    %163 = arith.mulf %161, %162 : vector<16x32xf32>
    %164 = vector.extract_strided_slice %48 {offsets = [16, 0], sizes = [16, 32], strides = [1, 1]} : vector<32x32xf32> to vector<16x32xf32>
    %165 = vector.broadcast %160 : vector<1x1xf32> to vector<16x32xf32>
    %166 = arith.mulf %164, %165 : vector<16x32xf32>
    %167 = arith.addf %163, %166 : vector<16x32xf32>
    %c16_72 = arith.constant 16 : index
    %c0_73 = arith.constant 0 : index
    %168 = vector.load %arg2[%c16_72, %c0_73] : memref<32x32xf32, #tpu.memory_space<vmem>>, vector<16x32xf32>
    tpu.vector_store %arg2[%c16_72, %c0_73], %167 {strides = array<i32>} : memref<32x32xf32, #tpu.memory_space<vmem>>, vector<16x32xf32>,
    return
  }
}

</mosaic_0001>

<llo_original>
// kernel: forward.1
$region0: #{forward.1}
  #allocation0 [shape = 'u32[]', space=smem, size = 0x4, offset = 0x4, fixed_abs, tag = 'smem constant byte address 0x4 - core index']
  #allocation1 [shape = 'u32[144,128]{1,0:T(1,128)}', space=vmem, size = 0x12000, scoped, tag = 'internal scratch']
  %s0 = inlined_call_operand.vmem [shape: f32[32,128], index: 0, kind: input, shape index: {}]
  %s1 = inlined_call_operand.vmem [shape: f32[344,128], index: 1, kind: input, shape index: {}]
  %s2 = inlined_call_operand.hbm [shape: f32[32,32], index: 2, kind: output, shape index: {}]
  %s3 = sld [smem:[#allocation0]]
  $region18: #{forward.1} parent=0
    _
  %s5 = ssub.s32 1, %s3
  %s6 = scalar_select 0, %s5, %s3
  $region1: #{forward.1} parent=0
    #allocation2 [shape = 'u8[16384]{0}', space=vmem, size = 0x4000, scoped, tag = 'output window, operand 0, single buffered']
    #allocation3 [shape = 's32[1]{0}', space=sflag, size = 0x4, scoped, tag = 'scoped memory for forward.1']
    %7 = vsyncpa [#allocation3], 0
    // Predicated region
    $region2: #{forward.1} parent=1 // pred_check
      _
    $region3: #{forward.1} parent=1 // pred_check_branch
      %9 = sbr.rel (0) target = $region5
    $region4: #{forward.1} parent=1 // pred_region
      _
    $region5: #{forward.1} parent=1 // pred_fallthru
      _
    // Predicated region
    $region6: #{forward.1} parent=1 // pred_check
      _
    $region7: #{forward.1} parent=1 // pred_check_branch
      %11 = sbr.rel (0) target = $region9
    $region8: #{forward.1} parent=1 // pred_region
      _
    $region9: #{forward.1} parent=1 // pred_fallthru
      _
    %v12 = vld [vmem:[%s0] sm:$0xff]
    %v13 = vld [vmem:[%s0 + $0x8] sm:$0xff]
    %v14 = vld [vmem:[%s0 + $0x10] sm:$0xff]
    %v15 = vld [vmem:[%s0 + $0x18] sm:$0xff]
    %v16 = vld [vmem:[%s1] sm:$0xff]
    %v17 = vld [vmem:[%s1 + $0x8] sm:$0xff]
    %v18 = vld [vmem:[%s1 + $0x10] sm:$0xff]
    %v19 = vld [vmem:[%s1 + $0x18] sm:$0xff]
    %v20 = vld [vmem:[%s1 + $0x20] sm:$0xff]
    %v21 = vld [vmem:[%s1 + $0x28] sm:$0xff]
    %v22 = vld [vmem:[%s1 + $0x30] sm:$0xff]
    %v23 = vld [vmem:[%s1 + $0x38] sm:$0xff]
    %v24 = vld [vmem:[%s1 + $0x40] sm:$0xff]
    %v25 = vld [vmem:[%s1 + $0x48] sm:$0xff]
    %v26 = vld [vmem:[%s1 + $0x50] sm:$0xff]
    %v27 = vld [vmem:[%s1 + $0x58] sm:$0xff]
    %v28 = vld [vmem:[%s1 + $0x60] sm:$0xff]
    %v29 = vld [vmem:[%s1 + $0x68] sm:$0xff]
    %v30 = vld [vmem:[%s1 + $0x70] sm:$0xff]
    %v31 = vld [vmem:[%s1 + $0x78] sm:$0xff]
    %v32 = vld [vmem:[%s1 + $0x80] sm:$0xff]
    %v33 = vld [vmem:[%s1 + $0x88] sm:$0xff]
    %v34 = vld [vmem:[%s1 + $0x90] sm:$0xff]
    %v35 = vld [vmem:[%s1 + $0x98] sm:$0xff]
    %v36 = vld [vmem:[%s1 + $0xa0] sm:$0xff]
    %v37 = vld [vmem:[%s1 + $0xa8] sm:$0xff]
    %v38 = vld [vmem:[%s1 + $0xb0] sm:$0xff]
    %v39 = vld [vmem:[%s1 + $0xb8] sm:$0xff]
    %v40 = vld [vmem:[%s1 + $0xc0] sm:$0xff]
    %v41 = vld [vmem:[%s1 + $0xc8] sm:$0xff]
    %v42 = vld [vmem:[%s1 + $0xd0] sm:$0xff]
    %v43 = vld [vmem:[%s1 + $0xd8] sm:$0xff]
    %v44 = vld [vmem:[%s1 + $0xe0] sm:$0xff]
    %v45 = vld [vmem:[%s1 + $0x148] sm:$0x1]
    %v46 = vld [vmem:[%s1 + $0x150] sm:$0x3]
    %51 = vrot.lane.b32.xlu0 %v12, 112
    %v52 = vpop.permute.xlu0 %51
    %53 = vrot.lane.b32.xlu0 %v13, 112
    %v54 = vpop.permute.xlu0 %53
    %55 = vrot.lane.b32.xlu0 %v14, 112
    %v56 = vpop.permute.xlu0 %55
    %57 = vrot.lane.b32.xlu0 %v15, 112
    %v58 = vpop.permute.xlu0 %57
    %vm59 = vcmask 261120
    %v60 = vsel %vm59, %v52, 0
    %v62 = vsel %vm59, %v54, 0
    %v64 = vsel %vm59, %v56, 0
    %v66 = vsel %vm59, %v58, 0
    %68 = vmatprep.subr.mxu0 0.0
    %69 = vmatpush1.msra.mxu0 %v12
    %70 = vmatprep.subr.mxu0 0.0
    %71 = vmatpush1.msra.mxu0 %v13
    %72 = vmatprep.subr.mxu0 0.0
    %73 = vmatpush1.msra.mxu0 %v14
    %74 = vmatprep.subr.mxu0 0.0
    %75 = vmatpush1.msra.mxu0 %v15
    %76 = vmatprep.subr.mxu0 0.0
    %77 = vmatpush1.msra.mxu0 0.0
    %78 = vmatprep.subr.mxu0 0.0
    %79 = vmatpush1.msra.mxu0 0.0
    %80 = vmatprep.subr.mxu0 0.0
    %81 = vmatpush1.msra.mxu0 0.0
    %82 = vmatprep.subr.mxu0 0.0
    %83 = vmatpush1.msra.mxu0 0.0
    %84 = vmatprep.subr.mxu0 0.0
    %85 = vmatpush1.msra.mxu0 0.0
    %86 = vmatprep.subr.mxu0 0.0
    %87 = vmatpush1.msra.mxu0 0.0
    %88 = vmatprep.subr.mxu0 0.0
    %89 = vmatpush1.msra.mxu0 0.0
    %90 = vmatprep.subr.mxu0 0.0
    %91 = vmatpush1.msra.mxu0 0.0
    %92 = vmatprep.subr.mxu0 0.0
    %93 = vmatpush1.msra.mxu0 0.0
    %94 = vmatprep.subr.mxu0 0.0
    %95 = vmatpush1.msra.mxu0 0.0
    %96 = vmatprep.subr.mxu0 0.0
    %97 = vmatpush1.msra.mxu0 0.0
    %98 = vmatprep.subr.mxu0 0.0
    %99 = vmatpush1.msra.mxu0 0.0
    %100 = vmatprep.subr.mxu0 0.0
    %101 = vmatpush1.msra.mxu0 0.0
    %102 = vmatprep.subr.mxu0 0.0
    %103 = vmatpush1.msra.mxu0 0.0
    %104 = vmatprep.subr.mxu0 0.0
    %105 = vmatpush1.msra.mxu0 0.0
    %106 = vmatprep.subr.mxu0 0.0
    %107 = vmatpush1.msra.mxu0 0.0
    %108 = vmatprep.subr.mxu0 0.0
    %109 = vmatpush1.msra.mxu0 0.0
    %110 = vmatprep.subr.mxu0 0.0
    %111 = vmatpush1.msra.mxu0 0.0
    %112 = vmatprep.subr.mxu0 0.0
    %113 = vmatpush1.msra.mxu0 0.0
    %114 = vmatprep.subr.mxu0 0.0
    %115 = vmatpush1.msra.mxu0 0.0
    %116 = vmatprep.subr.mxu0 0.0
    %117 = vmatpush1.msra.mxu0 0.0
    %118 = vmatprep.subr.mxu0 0.0
    %119 = vmatpush1.msra.mxu0 0.0
    %120 = vmatprep.subr.mxu0 0.0
    %121 = vmatpush1.msra.mxu0 0.0
    %122 = vmatprep.subr.mxu0 0.0
    %123 = vmatpush1.msra.mxu0 0.0
    %124 = vmatprep.subr.mxu0 0.0
    %125 = vmatpush1.msra.mxu0 0.0
    %126 = vmatprep.subr.mxu0 0.0
    %127 = vmatpush1.msra.mxu0 0.0
    %128 = vmatprep.subr.mxu0 0.0
    %129 = vmatpush1.msra.mxu0 0.0
    %130 = vmatprep.subr.mxu0 0.0
    %131 = vmatpush1.msra.mxu0 0.0
    %132 = vmatprep.mubr.f32.mxu0 0.0
    %133 = vmatmul.mubr.f32.gmra.mrb[0].mxu0 %v60
    %v134 = vpop.f32.mrb[0].mxu0
    %v135 = vadd.f32 0.0, %v134
    %v136 = vpop.f32.mrb[0].mxu0
    %137 = vmatprep.mubr.f32.mxu0 0.0
    %138 = vmatmul.mubr.f32.gmra.mrb[0].mxu0 %v62
    %v139 = vpop.f32.mrb[0].mxu0
    %v140 = vadd.f32 0.0, %v139
    %v141 = vpop.f32.mrb[0].mxu0
    %142 = vmatprep.mubr.f32.mxu0 0.0
    %143 = vmatmul.mubr.f32.gmra.mrb[0].mxu0 %v64
    %v144 = vpop.f32.mrb[0].mxu0
    %v145 = vadd.f32 0.0, %v144
    %v146 = vpop.f32.mrb[0].mxu0
    %147 = vmatprep.mubr.f32.mxu0 0.0
    %148 = vmatmul.mubr.f32.gmra.mrb[0].mxu0 %v66
    %v149 = vpop.f32.mrb[0].mxu0
    %v150 = vadd.f32 0.0, %v149
    %v151 = vpop.f32.mrb[0].mxu0
    %152 = vdwg.mxu0
    %153 = vmatprep.subr.mxu0 0.0
    %154 = vmatpush1.msra.mxu0 %v135
    %155 = vmatprep.subr.mxu0 0.0
    %156 = vmatpush1.msra.mxu0 %v140
    %157 = vmatprep.subr.mxu0 0.0
    %158 = vmatpush1.msra.mxu0 %v145
    %159 = vmatprep.subr.mxu0 0.0
    %160 = vmatpush1.msra.mxu0 %v150
    %161 = vmatprep.subr.mxu0 0.0
    %162 = vmatpush1.msra.mxu0 0.0
    %163 = vmatprep.subr.mxu0 0.0
    %164 = vmatpush1.msra.mxu0 0.0
    %165 = vmatprep.subr.mxu0 0.0
    %166 = vmatpush1.msra.mxu0 0.0
    %167 = vmatprep.subr.mxu0 0.0
    %168 = vmatpush1.msra.mxu0 0.0
    %169 = vmatprep.subr.mxu0 0.0
    %170 = vmatpush1.msra.mxu0 0.0
    %171 = vmatprep.subr.mxu0 0.0
    %172 = vmatpush1.msra.mxu0 0.0
    %173 = vmatprep.subr.mxu0 0.0
    %174 = vmatpush1.msra.mxu0 0.0
    %175 = vmatprep.subr.mxu0 0.0
    %176 = vmatpush1.msra.mxu0 0.0
    %177 = vmatprep.subr.mxu0 0.0
    %178 = vmatpush1.msra.mxu0 0.0
    %179 = vmatprep.subr.mxu0 0.0
    %180 = vmatpush1.msra.mxu0 0.0
    %181 = vmatprep.subr.mxu0 0.0
    %182 = vmatpush1.msra.mxu0 0.0
    %183 = vmatprep.subr.mxu0 0.0
    %184 = vmatpush1.msra.mxu0 0.0
    %185 = vmatprep.subr.mxu0 0.0
    %186 = vmatpush1.msra.mxu0 0.0
    %187 = vmatprep.subr.mxu0 0.0
    %188 = vmatpush1.msra.mxu0 0.0
    %189 = vmatprep.subr.mxu0 0.0
    %190 = vmatpush1.msra.mxu0 0.0
    %191 = vmatprep.subr.mxu0 0.0
    %192 = vmatpush1.msra.mxu0 0.0
    %193 = vmatprep.subr.mxu0 0.0
    %194 = vmatpush1.msra.mxu0 0.0
    %195 = vmatprep.subr.mxu0 0.0
    %196 = vmatpush1.msra.mxu0 0.0
    %197 = vmatprep.subr.mxu0 0.0
    %198 = vmatpush1.msra.mxu0 0.0
    %199 = vmatprep.subr.mxu0 0.0
    %200 = vmatpush1.msra.mxu0 0.0
    %201 = vmatprep.subr.mxu0 0.0
    %202 = vmatpush1.msra.mxu0 0.0
    %203 = vmatprep.subr.mxu0 0.0
    %204 = vmatpush1.msra.mxu0 0.0
    %205 = vmatprep.subr.mxu0 0.0
    %206 = vmatpush1.msra.mxu0 0.0
    %207 = vmatprep.subr.mxu0 0.0
    %208 = vmatpush1.msra.mxu0 0.0
    %209 = vmatprep.subr.mxu0 0.0
    %210 = vmatpush1.msra.mxu0 0.0
    %211 = vmatprep.subr.mxu0 0.0
    %212 = vmatpush1.msra.mxu0 0.0
    %213 = vmatprep.subr.mxu0 0.0
    %214 = vmatpush1.msra.mxu0 0.0
    %215 = vmatprep.subr.mxu0 0.0
    %216 = vmatpush1.msra.mxu0 0.0
    %217 = vmatprep.mubr.f32.mxu0 0.0
    %218 = vmatmul.mubr.f32.gmra.mrb[0].mxu0 %v60
    %v219 = vpop.f32.mrb[0].mxu0
    %v220 = vadd.f32 0.0, %v219
    %v221 = vpop.f32.mrb[0].mxu0
    %222 = vmatprep.mubr.f32.mxu0 0.0
    %223 = vmatmul.mubr.f32.gmra.mrb[0].mxu0 %v62
    %v224 = vpop.f32.mrb[0].mxu0
    %v225 = vadd.f32 0.0, %v224
    %v226 = vpop.f32.mrb[0].mxu0
    %227 = vmatprep.mubr.f32.mxu0 0.0
    %228 = vmatmul.mubr.f32.gmra.mrb[0].mxu0 %v64
    %v229 = vpop.f32.mrb[0].mxu0
    %v230 = vadd.f32 0.0, %v229
    %v231 = vpop.f32.mrb[0].mxu0
    %232 = vmatprep.mubr.f32.mxu0 0.0
    %233 = vmatmul.mubr.f32.gmra.mrb[0].mxu0 %v66
    %v234 = vpop.f32.mrb[0].mxu0
    %v235 = vadd.f32 0.0, %v234
    %v236 = vpop.f32.mrb[0].mxu0
    %237 = vdwg.mxu0
    %v238 = vmul.f32 %v220, 2.0
    %v239 = vmul.f32 %v225, 2.0
    %v240 = vmul.f32 %v230, 2.0
    %v241 = vmul.f32 %v235, 2.0
    %v242 = vsub.f32 %v238, %v12
    %v243 = vsub.f32 %v239, %v13
    %v244 = vsub.f32 %v240, %v14
    %v245 = vsub.f32 %v241, %v15
    %250 = vrot.lane.b32.xlu0 %v135, 8
    %v251 = vpop.permute.xlu0 %250
    %252 = vrot.lane.b32.xlu0 %v140, 8
    %v253 = vpop.permute.xlu0 %252
    %254 = vrot.lane.b32.xlu0 %v145, 8
    %v255 = vpop.permute.xlu0 %254
    %256 = vrot.lane.b32.xlu0 %v150, 8
    %v257 = vpop.permute.xlu0 %256
    %266 = vrot.lane.b32.xlu0 %v242, 12
    %v267 = vpop.permute.xlu0 %266
    %268 = vrot.lane.b32.xlu0 %v243, 12
    %v269 = vpop.permute.xlu0 %268
    %270 = vrot.lane.b32.xlu0 %v244, 12
    %v271 = vpop.permute.xlu0 %270
    %272 = vrot.lane.b32.xlu0 %v245, 12
    %v273 = vpop.permute.xlu0 %272
    %vm278 = vcmask 64512
    %v279 = vsel %vm278, %v12, %v251
    %v280 = vsel %vm278, %v13, %v253
    %v281 = vsel %vm278, %v14, %v255
    %v282 = vsel %vm278, %v15, %v257
    %vm283 = vcmask 97280
    %v284 = vsel %vm283, %v279, %v267
    %v285 = vsel %vm283, %v280, %v269
    %v286 = vsel %vm283, %v281, %v271
    %v287 = vsel %vm283, %v282, %v273
    %vm288 = vcmask 130048
    %v290 = vsel %vm288, %v284, 0
    %v293 = vsel %vm288, %v285, 0
    %v296 = vsel %vm288, %v286, 0
    %v299 = vsel %vm288, %v287, 0
    %301 = vmatprep.subr.mxu0 0.0
    %302 = vmatpush1.msra.mxu0 %v16
    %303 = vmatprep.subr.mxu0 0.0
    %304 = vmatpush1.msra.mxu0 %v17
    %305 = vmatprep.subr.mxu0 0.0
    %306 = vmatpush1.msra.mxu0 0.0
    %307 = vmatprep.subr.mxu0 0.0
    %308 = vmatpush1.msra.mxu0 0.0
    %309 = vmatprep.subr.mxu0 0.0
    %310 = vmatpush1.msra.mxu0 0.0
    %311 = vmatprep.subr.mxu0 0.0
    %312 = vmatpush1.msra.mxu0 0.0
    %313 = vmatprep.subr.mxu0 0.0
    %314 = vmatpush1.msra.mxu0 0.0
    %315 = vmatprep.subr.mxu0 0.0
    %316 = vmatpush1.msra.mxu0 0.0
    %317 = vmatprep.subr.mxu0 0.0
    %318 = vmatpush1.msra.mxu0 0.0
    %319 = vmatprep.subr.mxu0 0.0
    %320 = vmatpush1.msra.mxu0 0.0
    %321 = vmatprep.subr.mxu0 0.0
    %322 = vmatpush1.msra.mxu0 0.0
    %323 = vmatprep.subr.mxu0 0.0
    %324 = vmatpush1.msra.mxu0 0.0
    %325 = vmatprep.subr.mxu0 0.0
    %326 = vmatpush1.msra.mxu0 0.0
    %327 = vmatprep.subr.mxu0 0.0
    %328 = vmatpush1.msra.mxu0 0.0
    %329 = vmatprep.subr.mxu0 0.0
    %330 = vmatpush1.msra.mxu0 0.0
    %331 = vmatprep.subr.mxu0 0.0
    %332 = vmatpush1.msra.mxu0 0.0
    %333 = vmatprep.subr.mxu0 0.0
    %334 = vmatpush1.msra.mxu0 0.0
    %335 = vmatprep.subr.mxu0 0.0
    %336 = vmatpush1.msra.mxu0 0.0
    %337 = vmatprep.subr.mxu0 0.0
    %338 = vmatpush1.msra.mxu0 0.0
    %339 = vmatprep.subr.mxu0 0.0
    %340 = vmatpush1.msra.mxu0 0.0
    %341 = vmatprep.subr.mxu0 0.0
    %342 = vmatpush1.msra.mxu0 0.0
    %343 = vmatprep.subr.mxu0 0.0
    %344 = vmatpush1.msra.mxu0 0.0
    %345 = vmatprep.subr.mxu0 0.0
    %346 = vmatpush1.msra.mxu0 0.0
    %347 = vmatprep.subr.mxu0 0.0
    %348 = vmatpush1.msra.mxu0 0.0
    %349 = vmatprep.subr.mxu0 0.0
    %350 = vmatpush1.msra.mxu0 0.0
    %351 = vmatprep.subr.mxu0 0.0
    %352 = vmatpush1.msra.mxu0 0.0
    %353 = vmatprep.subr.mxu0 0.0
    %354 = vmatpush1.msra.mxu0 0.0
    %355 = vmatprep.subr.mxu0 0.0
    %356 = vmatpush1.msra.mxu0 0.0
    %357 = vmatprep.subr.mxu0 0.0
    %358 = vmatpush1.msra.mxu0 0.0
    %359 = vmatprep.subr.mxu0 0.0
    %360 = vmatpush1.msra.mxu0 0.0
    %361 = vmatprep.subr.mxu0 0.0
    %362 = vmatpush1.msra.mxu0 0.0
    %363 = vmatprep.subr.mxu0 0.0
    %364 = vmatpush1.msra.mxu0 0.0
    %365 = vmatprep.mubr.f32.mxu0 0.0
    %366 = vmatmul.mubr.f32.gmra.mrb[0].mxu0 %v290
    %v367 = vpop.f32.mrb[0].mxu0
    %v368 = vadd.f32 0.0, %v367
    %v369 = vpop.f32.mrb[0].mxu0
    %370 = vmatprep.mubr.f32.mxu0 0.0
    %371 = vmatmul.mubr.f32.gmra.mrb[0].mxu0 %v293
    %v372 = vpop.f32.mrb[0].mxu0
    %v373 = vadd.f32 0.0, %v372
    %v374 = vpop.f32.mrb[0].mxu0
    %375 = vmatprep.mubr.f32.mxu0 0.0
    %376 = vmatmul.mubr.f32.gmra.mrb[0].mxu0 %v296
    %v377 = vpop.f32.mrb[0].mxu0
    %v378 = vadd.f32 0.0, %v377
    %v379 = vpop.f32.mrb[0].mxu0
    %380 = vmatprep.mubr.f32.mxu0 0.0
    %381 = vmatmul.mubr.f32.gmra.mrb[0].mxu0 %v299
    %v382 = vpop.f32.mrb[0].mxu0
    %v383 = vadd.f32 0.0, %v382
    %v384 = vpop.f32.mrb[0].mxu0
    %385 = vdwg.mxu0
    %386 = vrot.lane.b32.xlu0 %v12, 120
    %v387 = vpop.permute.xlu0 %386
    %388 = vrot.lane.b32.xlu0 %v13, 120
    %v389 = vpop.permute.xlu0 %388
    %390 = vrot.lane.b32.xlu0 %v14, 120
    %v391 = vpop.permute.xlu0 %390
    %392 = vrot.lane.b32.xlu0 %v15, 120
    %v393 = vpop.permute.xlu0 %392
    %v394 = vsel %vm278, %v387, 0
    %v396 = vsel %vm278, %v389, 0
    %v398 = vsel %vm278, %v391, 0
    %v400 = vsel %vm278, %v393, 0
    %402 = vmatprep.subr.mxu0 0.0
    %403 = vmatpush1.msra.mxu0 %v18
    %404 = vmatprep.subr.mxu0 0.0
    %405 = vmatpush1.msra.mxu0 0.0
    %406 = vmatprep.subr.mxu0 0.0
    %407 = vmatpush1.msra.mxu0 0.0
    %408 = vmatprep.subr.mxu0 0.0
    %409 = vmatpush1.msra.mxu0 0.0
    %410 = vmatprep.subr.mxu0 0.0
    %411 = vmatpush1.msra.mxu0 0.0
    %412 = vmatprep.subr.mxu0 0.0
    %413 = vmatpush1.msra.mxu0 0.0
    %414 = vmatprep.subr.mxu0 0.0
    %415 = vmatpush1.msra.mxu0 0.0
    %416 = vmatprep.subr.mxu0 0.0
    %417 = vmatpush1.msra.mxu0 0.0
    %418 = vmatprep.subr.mxu0 0.0
    %419 = vmatpush1.msra.mxu0 0.0
    %420 = vmatprep.subr.mxu0 0.0
    %421 = vmatpush1.msra.mxu0 0.0
    %422 = vmatprep.subr.mxu0 0.0
    %423 = vmatpush1.msra.mxu0 0.0
    %424 = vmatprep.subr.mxu0 0.0
    %425 = vmatpush1.msra.mxu0 0.0
    %426 = vmatprep.subr.mxu0 0.0
    %427 = vmatpush1.msra.mxu0 0.0
    %428 = vmatprep.subr.mxu0 0.0
    %429 = vmatpush1.msra.mxu0 0.0
    %430 = vmatprep.subr.mxu0 0.0
    %431 = vmatpush1.msra.mxu0 0.0
    %432 = vmatprep.subr.mxu0 0.0
    %433 = vmatpush1.msra.mxu0 0.0
    %434 = vmatprep.subr.mxu0 0.0
    %435 = vmatpush1.msra.mxu0 0.0
    %436 = vmatprep.subr.mxu0 0.0
    %437 = vmatpush1.msra.mxu0 0.0
    %438 = vmatprep.subr.mxu0 0.0
    %439 = vmatpush1.msra.mxu0 0.0
    %440 = vmatprep.subr.mxu0 0.0
    %441 = vmatpush1.msra.mxu0 0.0
    %442 = vmatprep.subr.mxu0 0.0
    %443 = vmatpush1.msra.mxu0 0.0
    %444 = vmatprep.subr.mxu0 0.0
    %445 = vmatpush1.msra.mxu0 0.0
    %446 = vmatprep.subr.mxu0 0.0
    %447 = vmatpush1.msra.mxu0 0.0
    %448 = vmatprep.subr.mxu0 0.0
    %449 = vmatpush1.msra.mxu0 0.0
    %450 = vmatprep.subr.mxu0 0.0
    %451 = vmatpush1.msra.mxu0 0.0
    %452 = vmatprep.subr.mxu0 0.0
    %453 = vmatpush1.msra.mxu0 0.0
    %454 = vmatprep.subr.mxu0 0.0
    %455 = vmatpush1.msra.mxu0 0.0
    %456 = vmatprep.subr.mxu0 0.0
    %457 = vmatpush1.msra.mxu0 0.0
    %458 = vmatprep.subr.mxu0 0.0
    %459 = vmatpush1.msra.mxu0 0.0
    %460 = vmatprep.subr.mxu0 0.0
    %461 = vmatpush1.msra.mxu0 0.0
    %462 = vmatprep.subr.mxu0 0.0
    %463 = vmatpush1.msra.mxu0 0.0
    %464 = vmatprep.subr.mxu0 0.0
    %465 = vmatpush1.msra.mxu0 0.0
    %466 = vmatprep.mubr.f32.mxu0 0.0
    %467 = vmatmul.mubr.f32.gmra.mrb[0].mxu0 %v394
    %v468 = vpop.f32.mrb[0].mxu0
    %v469 = vadd.f32 0.0, %v468
    %v470 = vpop.f32.mrb[0].mxu0
    %471 = vmatprep.mubr.f32.mxu0 0.0
    %472 = vmatmul.mubr.f32.gmra.mrb[0].mxu0 %v396
    %v473 = vpop.f32.mrb[0].mxu0
    %v474 = vadd.f32 0.0, %v473
    %v475 = vpop.f32.mrb[0].mxu0
    %476 = vmatprep.mubr.f32.mxu0 0.0
    %477 = vmatmul.mubr.f32.gmra.mrb[0].mxu0 %v398
    %v478 = vpop.f32.mrb[0].mxu0
    %v479 = vadd.f32 0.0, %v478
    %v480 = vpop.f32.mrb[0].mxu0
    %481 = vmatprep.mubr.f32.mxu0 0.0
    %482 = vmatmul.mubr.f32.gmra.mrb[0].mxu0 %v400
    %v483 = vpop.f32.mrb[0].mxu0
    %v484 = vadd.f32 0.0, %v483
    %v485 = vpop.f32.mrb[0].mxu0
    %486 = vdwg.mxu0
    %v487 = vmul.f32 %v368, %v469
    %v488 = vmul.f32 %v373, %v474
    %v489 = vmul.f32 %v378, %v479
    %v490 = vmul.f32 %v383, %v484
    %vm491 = vcmask 850944
    %v493 = vsel %vm491, %v487, 0
    %v496 = vsel %vm491, %v488, 0
    %v499 = vsel %vm491, %v489, 0
    %v502 = vsel %vm491, %v490, 0
    %504 = vmatprep.subr.mxu0 0.0
    %505 = vmatpush1.msra.mxu0 %v19
    %506 = vmatprep.subr.mxu0 0.0
    %507 = vmatpush1.msra.mxu0 %v20
    %508 = vmatprep.subr.mxu0 0.0
    %509 = vmatpush1.msra.mxu0 %v21
    %510 = vmatprep.subr.mxu0 0.0
    %511 = vmatpush1.msra.mxu0 %v22
    %512 = vmatprep.subr.mxu0 0.0
    %513 = vmatpush1.msra.mxu0 %v23
    %514 = vmatprep.subr.mxu0 0.0
    %515 = vmatpush1.msra.mxu0 %v24
    %516 = vmatprep.subr.mxu0 0.0
    %517 = vmatpush1.msra.mxu0 %v25
    %518 = vmatprep.subr.mxu0 0.0
    %519 = vmatpush1.msra.mxu0 %v26
    %520 = vmatprep.subr.mxu0 0.0
    %521 = vmatpush1.msra.mxu0 %v27
    %522 = vmatprep.subr.mxu0 0.0
    %523 = vmatpush1.msra.mxu0 %v28
    %524 = vmatprep.subr.mxu0 0.0
    %525 = vmatpush1.msra.mxu0 %v29
    %526 = vmatprep.subr.mxu0 0.0
    %527 = vmatpush1.msra.mxu0 %v30
    %528 = vmatprep.subr.mxu0 0.0
    %529 = vmatpush1.msra.mxu0 %v31
    %530 = vmatprep.subr.mxu0 0.0
    %531 = vmatpush1.msra.mxu0 0.0
    %532 = vmatprep.subr.mxu0 0.0
    %533 = vmatpush1.msra.mxu0 0.0
    %534 = vmatprep.subr.mxu0 0.0
    %535 = vmatpush1.msra.mxu0 0.0
    %536 = vmatprep.subr.mxu0 0.0
    %537 = vmatpush1.msra.mxu0 0.0
    %538 = vmatprep.subr.mxu0 0.0
    %539 = vmatpush1.msra.mxu0 0.0
    %540 = vmatprep.subr.mxu0 0.0
    %541 = vmatpush1.msra.mxu0 0.0
    %542 = vmatprep.subr.mxu0 0.0
    %543 = vmatpush1.msra.mxu0 0.0
    %544 = vmatprep.subr.mxu0 0.0
    %545 = vmatpush1.msra.mxu0 0.0
    %546 = vmatprep.subr.mxu0 0.0
    %547 = vmatpush1.msra.mxu0 0.0
    %548 = vmatprep.subr.mxu0 0.0
    %549 = vmatpush1.msra.mxu0 0.0
    %550 = vmatprep.subr.mxu0 0.0
    %551 = vmatpush1.msra.mxu0 0.0
    %552 = vmatprep.subr.mxu0 0.0
    %553 = vmatpush1.msra.mxu0 0.0
    %554 = vmatprep.subr.mxu0 0.0
    %555 = vmatpush1.msra.mxu0 0.0
    %556 = vmatprep.subr.mxu0 0.0
    %557 = vmatpush1.msra.mxu0 0.0
    %558 = vmatprep.subr.mxu0 0.0
    %559 = vmatpush1.msra.mxu0 0.0
    %560 = vmatprep.subr.mxu0 0.0
    %561 = vmatpush1.msra.mxu0 0.0
    %562 = vmatprep.subr.mxu0 0.0
    %563 = vmatpush1.msra.mxu0 0.0
    %564 = vmatprep.subr.mxu0 0.0
    %565 = vmatpush1.msra.mxu0 0.0
    %566 = vmatprep.subr.mxu0 0.0
    %567 = vmatpush1.msra.mxu0 0.0
    %568 = vmatprep.mubr.f32.mxu0 0.0
    %569 = vmatmul.mubr.f32.gmra.mrb[0].mxu0 %v493
    %v570 = vpop.f32.mrb[0].mxu0
    %v571 = vadd.f32 0.0, %v570
    %v572 = vpop.f32.mrb[0].mxu0
    %573 = vmatprep.mubr.f32.mxu0 0.0
    %574 = vmatmul.mubr.f32.gmra.mrb[0].mxu0 %v496
    %v575 = vpop.f32.mrb[0].mxu0
    %v576 = vadd.f32 0.0, %v575
    %v577 = vpop.f32.mrb[0].mxu0
    %578 = vmatprep.mubr.f32.mxu0 0.0
    %579 = vmatmul.mubr.f32.gmra.mrb[0].mxu0 %v499
    %v580 = vpop.f32.mrb[0].mxu0
    %v581 = vadd.f32 0.0, %v580
    %v582 = vpop.f32.mrb[0].mxu0
    %583 = vmatprep.mubr.f32.mxu0 0.0
    %584 = vmatmul.mubr.f32.gmra.mrb[0].mxu0 %v502
    %v585 = vpop.f32.mrb[0].mxu0
    %v586 = vadd.f32 0.0, %v585
    %v587 = vpop.f32.mrb[0].mxu0
    %588 = vdwg.mxu0
    %v589 = vsel %vm278, %v12, 0
    %v591 = vsel %vm278, %v13, 0
    %v593 = vsel %vm278, %v14, 0
    %v595 = vsel %vm278, %v15, 0
    %597 = vmatprep.subr.mxu0 0.0
    %598 = vmatpush1.msra.mxu0 %v32
    %599 = vmatprep.subr.mxu0 0.0
    %600 = vmatpush1.msra.mxu0 0.0
    %601 = vmatprep.subr.mxu0 0.0
    %602 = vmatpush1.msra.mxu0 0.0
    %603 = vmatprep.subr.mxu0 0.0
    %604 = vmatpush1.msra.mxu0 0.0
    %605 = vmatprep.subr.mxu0 0.0
    %606 = vmatpush1.msra.mxu0 0.0
    %607 = vmatprep.subr.mxu0 0.0
    %608 = vmatpush1.msra.mxu0 0.0
    %609 = vmatprep.subr.mxu0 0.0
    %610 = vmatpush1.msra.mxu0 0.0
    %611 = vmatprep.subr.mxu0 0.0
    %612 = vmatpush1.msra.mxu0 0.0
    %613 = vmatprep.subr.mxu0 0.0
    %614 = vmatpush1.msra.mxu0 0.0
    %615 = vmatprep.subr.mxu0 0.0
    %616 = vmatpush1.msra.mxu0 0.0
    %617 = vmatprep.subr.mxu0 0.0
    %618 = vmatpush1.msra.mxu0 0.0
    %619 = vmatprep.subr.mxu0 0.0
    %620 = vmatpush1.msra.mxu0 0.0
    %621 = vmatprep.subr.mxu0 0.0
    %622 = vmatpush1.msra.mxu0 0.0
    %623 = vmatprep.subr.mxu0 0.0
    %624 = vmatpush1.msra.mxu0 0.0
    %625 = vmatprep.subr.mxu0 0.0
    %626 = vmatpush1.msra.mxu0 0.0
    %627 = vmatprep.subr.mxu0 0.0
    %628 = vmatpush1.msra.mxu0 0.0
    %629 = vmatprep.subr.mxu0 0.0
    %630 = vmatpush1.msra.mxu0 0.0
    %631 = vmatprep.subr.mxu0 0.0
    %632 = vmatpush1.msra.mxu0 0.0
    %633 = vmatprep.subr.mxu0 0.0
    %634 = vmatpush1.msra.mxu0 0.0
    %635 = vmatprep.subr.mxu0 0.0
    %636 = vmatpush1.msra.mxu0 0.0
    %637 = vmatprep.subr.mxu0 0.0
    %638 = vmatpush1.msra.mxu0 0.0
    %639 = vmatprep.subr.mxu0 0.0
    %640 = vmatpush1.msra.mxu0 0.0
    %641 = vmatprep.subr.mxu0 0.0
    %642 = vmatpush1.msra.mxu0 0.0
    %643 = vmatprep.subr.mxu0 0.0
    %644 = vmatpush1.msra.mxu0 0.0
    %645 = vmatprep.subr.mxu0 0.0
    %646 = vmatpush1.msra.mxu0 0.0
    %647 = vmatprep.subr.mxu0 0.0
    %648 = vmatpush1.msra.mxu0 0.0
    %649 = vmatprep.subr.mxu0 0.0
    %650 = vmatpush1.msra.mxu0 0.0
    %651 = vmatprep.subr.mxu0 0.0
    %652 = vmatpush1.msra.mxu0 0.0
    %653 = vmatprep.subr.mxu0 0.0
    %654 = vmatpush1.msra.mxu0 0.0
    %655 = vmatprep.subr.mxu0 0.0
    %656 = vmatpush1.msra.mxu0 0.0
    %657 = vmatprep.subr.mxu0 0.0
    %658 = vmatpush1.msra.mxu0 0.0
    %659 = vmatprep.subr.mxu0 0.0
    %660 = vmatpush1.msra.mxu0 0.0
    %661 = vmatprep.mubr.f32.mxu0 0.0
    %662 = vmatmul.mubr.f32.gmra.mrb[0].mxu0 %v589
    %v663 = vpop.f32.mrb[0].mxu0
    %v664 = vadd.f32 0.0, %v663
    %v665 = vpop.f32.mrb[0].mxu0
    %666 = vmatprep.mubr.f32.mxu0 0.0
    %667 = vmatmul.mubr.f32.gmra.mrb[0].mxu0 %v591
    %v668 = vpop.f32.mrb[0].mxu0
    %v669 = vadd.f32 0.0, %v668
    %v670 = vpop.f32.mrb[0].mxu0
    %671 = vmatprep.mubr.f32.mxu0 0.0
    %672 = vmatmul.mubr.f32.gmra.mrb[0].mxu0 %v593
    %v673 = vpop.f32.mrb[0].mxu0
    %v674 = vadd.f32 0.0, %v673
    %v675 = vpop.f32.mrb[0].mxu0
    %676 = vmatprep.mubr.f32.mxu0 0.0
    %677 = vmatmul.mubr.f32.gmra.mrb[0].mxu0 %v595
    %v678 = vpop.f32.mrb[0].mxu0
    %v679 = vadd.f32 0.0, %v678
    %v680 = vpop.f32.mrb[0].mxu0
    %681 = vdwg.mxu0
    %v683 = vsel %vm59, %v33, 0
    %v686 = vsel %vm59, %v34, 0
    %v689 = vsel %vm59, %v35, 0
    %v692 = vsel %vm59, %v36, 0
    %v695 = vsel %vm59, %v37, 0
    %v698 = vsel %vm59, %v38, 0
    %v701 = vsel %vm59, %v39, 0
    %v704 = vsel %vm59, %v40, 0
    %v707 = vsel %vm59, %v41, 0
    %v710 = vsel %vm59, %v42, 0
    %v713 = vsel %vm59, %v43, 0
    %v716 = vsel %vm59, %v44, 0
    %718 = vmatprep.subr.mxu0 0.0
    %719 = vmatpush1.msra.mxu0 %v664
    %720 = vmatprep.subr.mxu0 0.0
    %721 = vmatpush1.msra.mxu0 %v669
    %722 = vmatprep.subr.mxu0 0.0
    %723 = vmatpush1.msra.mxu0 %v674
    %724 = vmatprep.subr.mxu0 0.0
    %725 = vmatpush1.msra.mxu0 %v679
    %726 = vmatprep.subr.mxu0 0.0
    %727 = vmatpush1.msra.mxu0 0.0
    %728 = vmatprep.subr.mxu0 0.0
    %729 = vmatpush1.msra.mxu0 0.0
    %730 = vmatprep.subr.mxu0 0.0
    %731 = vmatpush1.msra.mxu0 0.0
    %732 = vmatprep.subr.mxu0 0.0
    %733 = vmatpush1.msra.mxu0 0.0
    %734 = vmatprep.subr.mxu0 0.0
    %735 = vmatpush1.msra.mxu0 0.0
    %736 = vmatprep.subr.mxu0 0.0
    %737 = vmatpush1.msra.mxu0 0.0
    %738 = vmatprep.subr.mxu0 0.0
    %739 = vmatpush1.msra.mxu0 0.0
    %740 = vmatprep.subr.mxu0 0.0
    %741 = vmatpush1.msra.mxu0 0.0
    %742 = vmatprep.subr.mxu0 0.0
    %743 = vmatpush1.msra.mxu0 0.0
    %744 = vmatprep.subr.mxu0 0.0
    %745 = vmatpush1.msra.mxu0 0.0
    %746 = vmatprep.subr.mxu0 0.0
    %747 = vmatpush1.msra.mxu0 0.0
    %748 = vmatprep.subr.mxu0 0.0
    %749 = vmatpush1.msra.mxu0 0.0
    %750 = vmatprep.subr.mxu0 0.0
    %751 = vmatpush1.msra.mxu0 0.0
    %752 = vmatprep.subr.mxu0 0.0
    %753 = vmatpush1.msra.mxu0 0.0
    %754 = vmatprep.subr.mxu0 0.0
    %755 = vmatpush1.msra.mxu0 0.0
    %756 = vmatprep.subr.mxu0 0.0
    %757 = vmatpush1.msra.mxu0 0.0
    %758 = vmatprep.subr.mxu0 0.0
    %759 = vmatpush1.msra.mxu0 0.0
    %760 = vmatprep.subr.mxu0 0.0
    %761 = vmatpush1.msra.mxu0 0.0
    %762 = vmatprep.subr.mxu0 0.0
    %763 = vmatpush1.msra.mxu0 0.0
    %764 = vmatprep.subr.mxu0 0.0
    %765 = vmatpush1.msra.mxu0 0.0
    %766 = vmatprep.subr.mxu0 0.0
    %767 = vmatpush1.msra.mxu0 0.0
    %768 = vmatprep.subr.mxu0 0.0
    %769 = vmatpush1.msra.mxu0 0.0
    %770 = vmatprep.subr.mxu0 0.0
    %771 = vmatpush1.msra.mxu0 0.0
    %772 = vmatprep.subr.mxu0 0.0
    %773 = vmatpush1.msra.mxu0 0.0
    %774 = vmatprep.subr.mxu0 0.0
    %775 = vmatpush1.msra.mxu0 0.0
    %776 = vmatprep.subr.mxu0 0.0
    %777 = vmatpush1.msra.mxu0 0.0
    %778 = vmatprep.subr.mxu0 0.0
    %779 = vmatpush1.msra.mxu0 0.0
    %780 = vmatprep.subr.mxu0 0.0
    %781 = vmatpush1.msra.mxu0 0.0
    %782 = vmatprep.mubr.f32.mxu0 0.0
    %783 = vmatmul.mubr.f32.gmra.mrb[0].mxu0 %v683
    %v784 = vpop.f32.mrb[0].mxu0
    %v785 = vadd.f32 0.0, %v784
    %v786 = vpop.f32.mrb[0].mxu0
    %787 = vmatprep.mubr.f32.mxu0 0.0
    %788 = vmatmul.mubr.f32.gmra.mrb[0].mxu0 %v686
    %v789 = vpop.f32.mrb[0].mxu0
    %v790 = vadd.f32 0.0, %v789
    %v791 = vpop.f32.mrb[0].mxu0
    %792 = vmatprep.mubr.f32.mxu0 0.0
    %793 = vmatmul.mubr.f32.gmra.mrb[0].mxu0 %v689
    %v794 = vpop.f32.mrb[0].mxu0
    %v795 = vadd.f32 0.0, %v794
    %v796 = vpop.f32.mrb[0].mxu0
    %797 = vmatprep.mubr.f32.mxu0 0.0
    %798 = vmatmul.mubr.f32.gmra.mrb[0].mxu0 %v692
    %v799 = vpop.f32.mrb[0].mxu0
    %v800 = vadd.f32 0.0, %v799
    %v801 = vpop.f32.mrb[0].mxu0
    %802 = vmatprep.mubr.f32.mxu0 0.0
    %803 = vmatmul.mubr.f32.gmra.mrb[0].mxu0 %v695
    %v804 = vpop.f32.mrb[0].mxu0
    %v805 = vadd.f32 0.0, %v804
    %v806 = vpop.f32.mrb[0].mxu0
    %807 = vmatprep.mubr.f32.mxu0 0.0
    %808 = vmatmul.mubr.f32.gmra.mrb[0].mxu0 %v698
    %v809 = vpop.f32.mrb[0].mxu0
    %v810 = vadd.f32 0.0, %v809
    %v811 = vpop.f32.mrb[0].mxu0
    %812 = vmatprep.mubr.f32.mxu0 0.0
    %813 = vmatmul.mubr.f32.gmra.mrb[0].mxu0 %v701
    %v814 = vpop.f32.mrb[0].mxu0
    %v815 = vadd.f32 0.0, %v814
    %v816 = vpop.f32.mrb[0].mxu0
    %817 = vmatprep.mubr.f32.mxu0 0.0
    %818 = vmatmul.mubr.f32.gmra.mrb[0].mxu0 %v704
    %v819 = vpop.f32.mrb[0].mxu0
    %v820 = vadd.f32 0.0, %v819
    %v821 = vpop.f32.mrb[0].mxu0
    %822 = vmatprep.mubr.f32.mxu0 0.0
    %823 = vmatmul.mubr.f32.gmra.mrb[0].mxu0 %v707
    %v824 = vpop.f32.mrb[0].mxu0
    %v825 = vadd.f32 0.0, %v824
    %v826 = vpop.f32.mrb[0].mxu0
    %827 = vmatprep.mubr.f32.mxu0 0.0
    %828 = vmatmul.mubr.f32.gmra.mrb[0].mxu0 %v710
    %v829 = vpop.f32.mrb[0].mxu0
    %v830 = vadd.f32 0.0, %v829
    %v831 = vpop.f32.mrb[0].mxu0
    %832 = vmatprep.mubr.f32.mxu0 0.0
    %833 = vmatmul.mubr.f32.gmra.mrb[0].mxu0 %v713
    %v834 = vpop.f32.mrb[0].mxu0
    %v835 = vadd.f32 0.0, %v834
    %v836 = vpop.f32.mrb[0].mxu0
    %837 = vmatprep.mubr.f32.mxu0 0.0
    %838 = vmatmul.mubr.f32.gmra.mrb[0].mxu0 %v716
    %v839 = vpop.f32.mrb[0].mxu0
    %v840 = vadd.f32 0.0, %v839
    %v841 = vpop.f32.mrb[0].mxu0
    %842 = vdwg.mxu0
    %v843 = vld [vmem:[%s1 + $0xe8] sm:$0xff]
    %v844 = vld [vmem:[%s1 + $0xf0] sm:$0xff]
    %v845 = vld [vmem:[%s1 + $0xf8] sm:$0xff]
    %v846 = vld [vmem:[%s1 + $0x100] sm:$0xff]
    %v848 = vsel %vm59, %v785, 0
    %v851 = vsel %vm59, %v790, 0
    %v854 = vsel %vm59, %v795, 0
    %v857 = vsel %vm59, %v800, 0
    %859 = vmatprep.subr.mxu0 0.0
    %860 = vmatpush1.msra.mxu0 %v843
    %861 = vmatprep.subr.mxu0 0.0
    %862 = vmatpush1.msra.mxu0 %v844
    %863 = vmatprep.subr.mxu0 0.0
    %864 = vmatpush1.msra.mxu0 %v845
    %865 = vmatprep.subr.mxu0 0.0
    %866 = vmatpush1.msra.mxu0 %v846
    %867 = vmatprep.subr.mxu0 0.0
    %868 = vmatpush1.msra.mxu0 0.0
    %869 = vmatprep.subr.mxu0 0.0
    %870 = vmatpush1.msra.mxu0 0.0
    %871 = vmatprep.subr.mxu0 0.0
    %872 = vmatpush1.msra.mxu0 0.0
    %873 = vmatprep.subr.mxu0 0.0
    %874 = vmatpush1.msra.mxu0 0.0
    %875 = vmatprep.subr.mxu0 0.0
    %876 = vmatpush1.msra.mxu0 0.0
    %877 = vmatprep.subr.mxu0 0.0
    %878 = vmatpush1.msra.mxu0 0.0
    %879 = vmatprep.subr.mxu0 0.0
    %880 = vmatpush1.msra.mxu0 0.0
    %881 = vmatprep.subr.mxu0 0.0
    %882 = vmatpush1.msra.mxu0 0.0
    %883 = vmatprep.subr.mxu0 0.0
    %884 = vmatpush1.msra.mxu0 0.0
    %885 = vmatprep.subr.mxu0 0.0
    %886 = vmatpush1.msra.mxu0 0.0
    %887 = vmatprep.subr.mxu0 0.0
    %888 = vmatpush1.msra.mxu0 0.0
    %889 = vmatprep.subr.mxu0 0.0
    %890 = vmatpush1.msra.mxu0 0.0
    %891 = vmatprep.subr.mxu0 0.0
    %892 = vmatpush1.msra.mxu0 0.0
    %893 = vmatprep.subr.mxu0 0.0
    %894 = vmatpush1.msra.mxu0 0.0
    %895 = vmatprep.subr.mxu0 0.0
    %896 = vmatpush1.msra.mxu0 0.0
    %897 = vmatprep.subr.mxu0 0.0
    %898 = vmatpush1.msra.mxu0 0.0
    %899 = vmatprep.subr.mxu0 0.0
    %900 = vmatpush1.msra.mxu0 0.0
    %901 = vmatprep.subr.mxu0 0.0
    %902 = vmatpush1.msra.mxu0 0.0
    %903 = vmatprep.subr.mxu0 0.0
    %904 = vmatpush1.msra.mxu0 0.0
    %905 = vmatprep.subr.mxu0 0.0
    %906 = vmatpush1.msra.mxu0 0.0
    %907 = vmatprep.subr.mxu0 0.0
    %908 = vmatpush1.msra.mxu0 0.0
    %909 = vmatprep.subr.mxu0 0.0
    %910 = vmatpush1.msra.mxu0 0.0
    %911 = vmatprep.subr.mxu0 0.0
    %912 = vmatpush1.msra.mxu0 0.0
    %913 = vmatprep.subr.mxu0 0.0
    %914 = vmatpush1.msra.mxu0 0.0
    %915 = vmatprep.subr.mxu0 0.0
    %916 = vmatpush1.msra.mxu0 0.0
    %917 = vmatprep.subr.mxu0 0.0
    %918 = vmatpush1.msra.mxu0 0.0
    %919 = vmatprep.subr.mxu0 0.0
    %920 = vmatpush1.msra.mxu0 0.0
    %921 = vmatprep.subr.mxu0 0.0
    %922 = vmatpush1.msra.mxu0 0.0
    %923 = vmatprep.mubr.f32.mxu0 0.0
    %924 = vmatmul.mubr.f32.gmra.mrb[0].mxu0 %v848
    %v925 = vpop.f32.mrb[0].mxu0
    %v926 = vadd.f32 0.0, %v925
    %v927 = vpop.f32.mrb[0].mxu0
    %928 = vmatprep.mubr.f32.mxu0 0.0
    %929 = vmatmul.mubr.f32.gmra.mrb[0].mxu0 %v851
    %v930 = vpop.f32.mrb[0].mxu0
    %v931 = vadd.f32 0.0, %v930
    %v932 = vpop.f32.mrb[0].mxu0
    %933 = vmatprep.mubr.f32.mxu0 0.0
    %934 = vmatmul.mubr.f32.gmra.mrb[0].mxu0 %v854
    %v935 = vpop.f32.mrb[0].mxu0
    %v936 = vadd.f32 0.0, %v935
    %v937 = vpop.f32.mrb[0].mxu0
    %938 = vmatprep.mubr.f32.mxu0 0.0
    %939 = vmatmul.mubr.f32.gmra.mrb[0].mxu0 %v857
    %v940 = vpop.f32.mrb[0].mxu0
    %v941 = vadd.f32 0.0, %v940
    %v942 = vpop.f32.mrb[0].mxu0
    %943 = vdwg.mxu0
    %v944 = vlaneseq
    %v945 = vshrl.u32 %v944, 7
    %v946 = vsub.s32 0, %v945
    %v947 = vrot.slane %v45, %v946
    %v948 = vadd.f32 %v947, %v926
    %v949 = vadd.f32 %v947, %v931
    %v950 = vadd.f32 %v947, %v936
    %v951 = vadd.f32 %v947, %v941
    %v952 = vld [vmem:[%s1 + $0x108] sm:$0xff]
    %v953 = vld [vmem:[%s1 + $0x110] sm:$0xff]
    %v954 = vld [vmem:[%s1 + $0x118] sm:$0xff]
    %v955 = vld [vmem:[%s1 + $0x120] sm:$0xff]
    %v957 = vsel %vm59, %v805, 0
    %v960 = vsel %vm59, %v810, 0
    %v963 = vsel %vm59, %v815, 0
    %v966 = vsel %vm59, %v820, 0
    %968 = vmatprep.subr.mxu0 0.0
    %969 = vmatpush1.msra.mxu0 %v952
    %970 = vmatprep.subr.mxu0 0.0
    %971 = vmatpush1.msra.mxu0 %v953
    %972 = vmatprep.subr.mxu0 0.0
    %973 = vmatpush1.msra.mxu0 %v954
    %974 = vmatprep.subr.mxu0 0.0
    %975 = vmatpush1.msra.mxu0 %v955
    %976 = vmatprep.subr.mxu0 0.0
    %977 = vmatpush1.msra.mxu0 0.0
    %978 = vmatprep.subr.mxu0 0.0
    %979 = vmatpush1.msra.mxu0 0.0
    %980 = vmatprep.subr.mxu0 0.0
    %981 = vmatpush1.msra.mxu0 0.0
    %982 = vmatprep.subr.mxu0 0.0
    %983 = vmatpush1.msra.mxu0 0.0
    %984 = vmatprep.subr.mxu0 0.0
    %985 = vmatpush1.msra.mxu0 0.0
    %986 = vmatprep.subr.mxu0 0.0
    %987 = vmatpush1.msra.mxu0 0.0
    %988 = vmatprep.subr.mxu0 0.0
    %989 = vmatpush1.msra.mxu0 0.0
    %990 = vmatprep.subr.mxu0 0.0
    %991 = vmatpush1.msra.mxu0 0.0
    %992 = vmatprep.subr.mxu0 0.0
    %993 = vmatpush1.msra.mxu0 0.0
    %994 = vmatprep.subr.mxu0 0.0
    %995 = vmatpush1.msra.mxu0 0.0
    %996 = vmatprep.subr.mxu0 0.0
    %997 = vmatpush1.msra.mxu0 0.0
    %998 = vmatprep.subr.mxu0 0.0
    %999 = vmatpush1.msra.mxu0 0.0
    %1000 = vmatprep.subr.mxu0 0.0
    %1001 = vmatpush1.msra.mxu0 0.0
    %1002 = vmatprep.subr.mxu0 0.0
    %1003 = vmatpush1.msra.mxu0 0.0
    %1004 = vmatprep.subr.mxu0 0.0
    %1005 = vmatpush1.msra.mxu0 0.0
    %1006 = vmatprep.subr.mxu0 0.0
    %1007 = vmatpush1.msra.mxu0 0.0
    %1008 = vmatprep.subr.mxu0 0.0
    %1009 = vmatpush1.msra.mxu0 0.0
    %1010 = vmatprep.subr.mxu0 0.0
    %1011 = vmatpush1.msra.mxu0 0.0
    %1012 = vmatprep.subr.mxu0 0.0
    %1013 = vmatpush1.msra.mxu0 0.0
    %1014 = vmatprep.subr.mxu0 0.0
    %1015 = vmatpush1.msra.mxu0 0.0
    %1016 = vmatprep.subr.mxu0 0.0
    %1017 = vmatpush1.msra.mxu0 0.0
    %1018 = vmatprep.subr.mxu0 0.0
    %1019 = vmatpush1.msra.mxu0 0.0
    %1020 = vmatprep.subr.mxu0 0.0
    %1021 = vmatpush1.msra.mxu0 0.0
    %1022 = vmatprep.subr.mxu0 0.0
    %1023 = vmatpush1.msra.mxu0 0.0
    %1024 = vmatprep.subr.mxu0 0.0
    %1025 = vmatpush1.msra.mxu0 0.0
    %1026 = vmatprep.subr.mxu0 0.0
    %1027 = vmatpush1.msra.mxu0 0.0
    %1028 = vmatprep.subr.mxu0 0.0
    %1029 = vmatpush1.msra.mxu0 0.0
    %1030 = vmatprep.subr.mxu0 0.0
    %1031 = vmatpush1.msra.mxu0 0.0
    %1032 = vmatprep.mubr.f32.mxu0 0.0
    %1033 = vmatmul.mubr.f32.gmra.mrb[0].mxu0 %v957
    %v1034 = vpop.f32.mrb[0].mxu0
    %v1035 = vadd.f32 0.0, %v1034
    %v1036 = vpop.f32.mrb[0].mxu0
    %1037 = vmatprep.mubr.f32.mxu0 0.0
    %1038 = vmatmul.mubr.f32.gmra.mrb[0].mxu0 %v960
    %v1039 = vpop.f32.mrb[0].mxu0
    %v1040 = vadd.f32 0.0, %v1039
    %v1041 = vpop.f32.mrb[0].mxu0
    %1042 = vmatprep.mubr.f32.mxu0 0.0
    %1043 = vmatmul.mubr.f32.gmra.mrb[0].mxu0 %v963
    %v1044 = vpop.f32.mrb[0].mxu0
    %v1045 = vadd.f32 0.0, %v1044
    %v1046 = vpop.f32.mrb[0].mxu0
    %1047 = vmatprep.mubr.f32.mxu0 0.0
    %1048 = vmatmul.mubr.f32.gmra.mrb[0].mxu0 %v966
    %v1049 = vpop.f32.mrb[0].mxu0
    %v1050 = vadd.f32 0.0, %v1049
    %v1051 = vpop.f32.mrb[0].mxu0
    %1052 = vdwg.mxu0
    %v1053 = vadd.f32 %v948, %v1035
    %v1054 = vadd.f32 %v949, %v1040
    %v1055 = vadd.f32 %v950, %v1045
    %v1056 = vadd.f32 %v951, %v1050
    %v1057 = vld [vmem:[%s1 + $0x128] sm:$0xff]
    %v1058 = vld [vmem:[%s1 + $0x130] sm:$0xff]
    %v1059 = vld [vmem:[%s1 + $0x138] sm:$0xff]
    %v1060 = vld [vmem:[%s1 + $0x140] sm:$0xff]
    %v1062 = vsel %vm59, %v825, 0
    %v1065 = vsel %vm59, %v830, 0
    %v1068 = vsel %vm59, %v835, 0
    %v1071 = vsel %vm59, %v840, 0
    %1073 = vmatprep.subr.mxu0 0.0
    %1074 = vmatpush1.msra.mxu0 %v1057
    %1075 = vmatprep.subr.mxu0 0.0
    %1076 = vmatpush1.msra.mxu0 %v1058
    %1077 = vmatprep.subr.mxu0 0.0
    %1078 = vmatpush1.msra.mxu0 %v1059
    %1079 = vmatprep.subr.mxu0 0.0
    %1080 = vmatpush1.msra.mxu0 %v1060
    %1081 = vmatprep.subr.mxu0 0.0
    %1082 = vmatpush1.msra.mxu0 0.0
    %1083 = vmatprep.subr.mxu0 0.0
    %1084 = vmatpush1.msra.mxu0 0.0
    %1085 = vmatprep.subr.mxu0 0.0
    %1086 = vmatpush1.msra.mxu0 0.0
    %1087 = vmatprep.subr.mxu0 0.0
    %1088 = vmatpush1.msra.mxu0 0.0
    %1089 = vmatprep.subr.mxu0 0.0
    %1090 = vmatpush1.msra.mxu0 0.0
    %1091 = vmatprep.subr.mxu0 0.0
    %1092 = vmatpush1.msra.mxu0 0.0
    %1093 = vmatprep.subr.mxu0 0.0
    %1094 = vmatpush1.msra.mxu0 0.0
    %1095 = vmatprep.subr.mxu0 0.0
    %1096 = vmatpush1.msra.mxu0 0.0
    %1097 = vmatprep.subr.mxu0 0.0
    %1098 = vmatpush1.msra.mxu0 0.0
    %1099 = vmatprep.subr.mxu0 0.0
    %1100 = vmatpush1.msra.mxu0 0.0
    %1101 = vmatprep.subr.mxu0 0.0
    %1102 = vmatpush1.msra.mxu0 0.0
    %1103 = vmatprep.subr.mxu0 0.0
    %1104 = vmatpush1.msra.mxu0 0.0
    %1105 = vmatprep.subr.mxu0 0.0
    %1106 = vmatpush1.msra.mxu0 0.0
    %1107 = vmatprep.subr.mxu0 0.0
    %1108 = vmatpush1.msra.mxu0 0.0
    %1109 = vmatprep.subr.mxu0 0.0
    %1110 = vmatpush1.msra.mxu0 0.0
    %1111 = vmatprep.subr.mxu0 0.0
    %1112 = vmatpush1.msra.mxu0 0.0
    %1113 = vmatprep.subr.mxu0 0.0
    %1114 = vmatpush1.msra.mxu0 0.0
    %1115 = vmatprep.subr.mxu0 0.0
    %1116 = vmatpush1.msra.mxu0 0.0
    %1117 = vmatprep.subr.mxu0 0.0
    %1118 = vmatpush1.msra.mxu0 0.0
    %1119 = vmatprep.subr.mxu0 0.0
    %1120 = vmatpush1.msra.mxu0 0.0
    %1121 = vmatprep.subr.mxu0 0.0
    %1122 = vmatpush1.msra.mxu0 0.0
    %1123 = vmatprep.subr.mxu0 0.0
    %1124 = vmatpush1.msra.mxu0 0.0
    %1125 = vmatprep.subr.mxu0 0.0
    %1126 = vmatpush1.msra.mxu0 0.0
    %1127 = vmatprep.subr.mxu0 0.0
    %1128 = vmatpush1.msra.mxu0 0.0
    %1129 = vmatprep.subr.mxu0 0.0
    %1130 = vmatpush1.msra.mxu0 0.0
    %1131 = vmatprep.subr.mxu0 0.0
    %1132 = vmatpush1.msra.mxu0 0.0
    %1133 = vmatprep.subr.mxu0 0.0
    %1134 = vmatpush1.msra.mxu0 0.0
    %1135 = vmatprep.subr.mxu0 0.0
    %1136 = vmatpush1.msra.mxu0 0.0
    %1137 = vmatprep.mubr.f32.mxu0 0.0
    %1138 = vmatmul.mubr.f32.gmra.mrb[0].mxu0 %v1062
    %v1139 = vpop.f32.mrb[0].mxu0
    %v1140 = vadd.f32 0.0, %v1139
    %v1141 = vpop.f32.mrb[0].mxu0
    %1142 = vmatprep.mubr.f32.mxu0 0.0
    %1143 = vmatmul.mubr.f32.gmra.mrb[0].mxu0 %v1065
    %v1144 = vpop.f32.mrb[0].mxu0
    %v1145 = vadd.f32 0.0, %v1144
    %v1146 = vpop.f32.mrb[0].mxu0
    %1147 = vmatprep.mubr.f32.mxu0 0.0
    %1148 = vmatmul.mubr.f32.gmra.mrb[0].mxu0 %v1068
    %v1149 = vpop.f32.mrb[0].mxu0
    %v1150 = vadd.f32 0.0, %v1149
    %v1151 = vpop.f32.mrb[0].mxu0
    %1152 = vmatprep.mubr.f32.mxu0 0.0
    %1153 = vmatmul.mubr.f32.gmra.mrb[0].mxu0 %v1071
    %v1154 = vpop.f32.mrb[0].mxu0
    %v1155 = vadd.f32 0.0, %v1154
    %v1156 = vpop.f32.mrb[0].mxu0
    %1157 = vdwg.mxu0
    %v1158 = vadd.f32 %v1053, %v1140
    %v1159 = vadd.f32 %v1054, %v1145
    %v1160 = vadd.f32 %v1055, %v1150
    %v1161 = vadd.f32 %v1056, %v1155
    %vm1162 = vcmp.gt.f32.partialorder %v571, 0.0
    %vm1163 = vcmp.gt.f32.partialorder %v576, 0.0
    %vm1164 = vcmp.gt.f32.partialorder %v581, 0.0
    %vm1165 = vcmp.gt.f32.partialorder %v586, 0.0
    %v1166 = vmul.f32 %v571, 0.01
    %v1167 = vmul.f32 %v576, 0.01
    %v1168 = vmul.f32 %v581, 0.01
    %v1169 = vmul.f32 %v586, 0.01
    %v1170 = vsel %vm1162, %v571, %v1166
    %v1171 = vsel %vm1163, %v576, %v1167
    %v1172 = vsel %vm1164, %v581, %v1168
    %v1173 = vsel %vm1165, %v586, %v1169
    %vm1174 = vcmp.gt.f32.partialorder %v1158, 0.0
    %vm1175 = vcmp.gt.f32.partialorder %v1159, 0.0
    %vm1176 = vcmp.gt.f32.partialorder %v1160, 0.0
    %vm1177 = vcmp.gt.f32.partialorder %v1161, 0.0
    %v1178 = vmul.f32 %v1158, 0.01
    %v1179 = vmul.f32 %v1159, 0.01
    %v1180 = vmul.f32 %v1160, 0.01
    %v1181 = vmul.f32 %v1161, 0.01
    %v1182 = vsel %vm1174, %v1158, %v1178
    %v1183 = vsel %vm1175, %v1159, %v1179
    %v1184 = vsel %vm1176, %v1160, %v1180
    %v1185 = vsel %vm1177, %v1161, %v1181
    %v1186 = vsel %vm59, %v1170, 0.0
    %v1187 = vsel %vm59, %v1171, 0.0
    %v1188 = vadd.f32 %v1186, %v1187
    %v1189 = vrot.slane %v1188, 4
    %v1190 = vadd.f32 %v1188, %v1189
    %v1191 = vrot.slane %v1190, 2
    %v1192 = vadd.f32 %v1190, %v1191
    %v1193 = vrot.slane %v1192, 1
    %v1194 = vadd.f32 %v1192, %v1193
    %v1195 = vrcp.pop 16.0
    %v1196 = vmul.f32 %v1194, %v1195
    %v1197 = vmul.f32 %v1196, %v46
    %vm1198 = vcmask 254976
    %v1199 = vsel %vm1198, %v1197, 0.0
    %1200 = vadd.xlane.f32.xlu0 %v1199
    %v1201 = vpop.xlane.xlu0 %1200
    %v1202 = vmax.f32 %v1201, 0.0
    %v1203 = vmul.f32 %v1202, %v46
    %1205 = vrot.lane.b32.xlu0 %v1203, 96
    %v1206 = vpop.permute.xlu0 %1205
    %v1208 = vsel %vm1198, %v1206, 0.0
    %1209 = vadd.xlane.f32.xlu0 %v1208
    %v1210 = vpop.xlane.xlu0 %1209
    %v1211 = vrot.slane %v1210, 4
    %v1212 = vadd.f32 %v1210, %v1211
    %v1213 = vrot.slane %v1212, 2
    %v1214 = vadd.f32 %v1212, %v1213
    %v1215 = vrot.slane %v1214, 1
    %v1216 = vadd.f32 %v1214, %v1215
    %s1217 = vtos %v1216
    %v1218 = vstv %s1217
    %v1219 = vrcp.pop 6.0
    %v1220 = vmul.f32 %v1218, %v1219
    %v1221 = vadd.f32 %v1220, 0.5
    %v1222 = vmax.f32 %v1221, 0.0
    %v1223 = vmin.f32 %v1222, 1.0
    %v1224 = vsel %vm59, %v1182, 0.0
    %v1225 = vsel %vm59, %v1183, 0.0
    %v1226 = vadd.f32 %v1224, %v1225
    %v1227 = vrot.slane %v1226, 4
    %v1228 = vadd.f32 %v1226, %v1227
    %v1229 = vrot.slane %v1228, 2
    %v1230 = vadd.f32 %v1228, %v1229
    %v1231 = vrot.slane %v1230, 1
    %v1232 = vadd.f32 %v1230, %v1231
    %v1233 = vmul.f32 %v1232, %v1195
    %1235 = vrot.lane.b32.xlu0 %v46, 64
    %v1236 = vpop.permute.xlu0 %1235
    %v1238 = vmul.f32 %v1233, %v1236
    %v1239 = vsel %vm1198, %v1238, 0.0
    %1240 = vadd.xlane.f32.xlu0 %v1239
    %v1241 = vpop.xlane.xlu0 %1240
    %v1242 = vmax.f32 %v1241, 0.0
    %v1243 = vmul.f32 %v1242, %v46
    %1245 = vrot.lane.b32.xlu0 %v1243, 32
    %v1246 = vpop.permute.xlu0 %1245
    %v1248 = vsel %vm1198, %v1246, 0.0
    %1249 = vadd.xlane.f32.xlu0 %v1248
    %v1250 = vpop.xlane.xlu0 %1249
    %v1251 = vrot.slane %v1250, 4
    %v1252 = vadd.f32 %v1250, %v1251
    %v1253 = vrot.slane %v1252, 2
    %v1254 = vadd.f32 %v1252, %v1253
    %v1255 = vrot.slane %v1254, 1
    %v1256 = vadd.f32 %v1254, %v1255
    %s1257 = vtos %v1256
    %v1258 = vstv %s1257
    %v1259 = vmul.f32 %v1258, %v1219
    %v1260 = vadd.f32 %v1259, 0.5
    %v1261 = vmax.f32 %v1260, 0.0
    %v1262 = vmin.f32 %v1261, 1.0
    %v1263 = vmul.f32 %v1170, %v1223
    %v1264 = vmul.f32 %v1171, %v1223
    %v1265 = vmul.f32 %v1182, %v1262
    %v1266 = vmul.f32 %v1183, %v1262
    %v1267 = vadd.f32 %v1263, %v1265
    %v1268 = vadd.f32 %v1264, %v1266
    %1269 = vst.msk [vmem:[#allocation2] sm:$0xff] %vm59, %v1267
    %1270 = vst.msk [vmem:[#allocation2 + $0x8] sm:$0xff] %vm59, %v1268
    %v1271 = vsel %vm59, %v1172, 0.0
    %v1272 = vsel %vm59, %v1173, 0.0
    %v1273 = vadd.f32 %v1271, %v1272
    %v1274 = vrot.slane %v1273, 4
    %v1275 = vadd.f32 %v1273, %v1274
    %v1276 = vrot.slane %v1275, 2
    %v1277 = vadd.f32 %v1275, %v1276
    %v1278 = vrot.slane %v1277, 1
    %v1279 = vadd.f32 %v1277, %v1278
    %v1280 = vmul.f32 %v1279, %v1195
    %v1281 = vmul.f32 %v1280, %v46
    %v1282 = vsel %vm1198, %v1281, 0.0
    %1283 = vadd.xlane.f32.xlu0 %v1282
    %v1284 = vpop.xlane.xlu0 %1283
    %v1285 = vmax.f32 %v1284, 0.0
    %v1286 = vmul.f32 %v1285, %v46
    %1288 = vrot.lane.b32.xlu0 %v1286, 96
    %v1289 = vpop.permute.xlu0 %1288
    %v1291 = vsel %vm1198, %v1289, 0.0
    %1292 = vadd.xlane.f32.xlu0 %v1291
    %v1293 = vpop.xlane.xlu0 %1292
    %v1294 = vrot.slane %v1293, 4
    %v1295 = vadd.f32 %v1293, %v1294
    %v1296 = vrot.slane %v1295, 2
    %v1297 = vadd.f32 %v1295, %v1296
    %v1298 = vrot.slane %v1297, 1
    %v1299 = vadd.f32 %v1297, %v1298
    %s1300 = vtos %v1299
    %v1301 = vstv %s1300
    %v1302 = vmul.f32 %v1301, %v1219
    %v1303 = vadd.f32 %v1302, 0.5
    %v1304 = vmax.f32 %v1303, 0.0
    %v1305 = vmin.f32 %v1304, 1.0
    %v1306 = vsel %vm59, %v1184, 0.0
    %v1307 = vsel %vm59, %v1185, 0.0
    %v1308 = vadd.f32 %v1306, %v1307
    %v1309 = vrot.slane %v1308, 4
    %v1310 = vadd.f32 %v1308, %v1309
    %v1311 = vrot.slane %v1310, 2
    %v1312 = vadd.f32 %v1310, %v1311
    %v1313 = vrot.slane %v1312, 1
    %v1314 = vadd.f32 %v1312, %v1313
    %v1315 = vmul.f32 %v1314, %v1195
    %v1316 = vmul.f32 %v1315, %v1236
    %v1317 = vsel %vm1198, %v1316, 0.0
    %1318 = vadd.xlane.f32.xlu0 %v1317
    %v1319 = vpop.xlane.xlu0 %1318
    %v1320 = vmax.f32 %v1319, 0.0
    %v1321 = vmul.f32 %v1320, %v46
    %1323 = vrot.lane.b32.xlu0 %v1321, 32
    %v1324 = vpop.permute.xlu0 %1323
    %v1326 = vsel %vm1198, %v1324, 0.0
    %1327 = vadd.xlane.f32.xlu0 %v1326
    %v1328 = vpop.xlane.xlu0 %1327
    %v1329 = vrot.slane %v1328, 4
    %v1330 = vadd.f32 %v1328, %v1329
    %v1331 = vrot.slane %v1330, 2
    %v1332 = vadd.f32 %v1330, %v1331
    %v1333 = vrot.slane %v1332, 1
    %v1334 = vadd.f32 %v1332, %v1333
    %s1335 = vtos %v1334
    %v1336 = vstv %s1335
    %v1337 = vmul.f32 %v1336, %v1219
    %v1338 = vadd.f32 %v1337, 0.5
    %v1339 = vmax.f32 %v1338, 0.0
    %v1340 = vmin.f32 %v1339, 1.0
    %v1341 = vmul.f32 %v1172, %v1305
    %v1342 = vmul.f32 %v1173, %v1305
    %v1343 = vmul.f32 %v1184, %v1340
    %v1344 = vmul.f32 %v1185, %v1340
    %v1345 = vadd.f32 %v1341, %v1343
    %v1346 = vadd.f32 %v1342, %v1344
    %1347 = vst.msk [vmem:[#allocation2 + $0x10] sm:$0xff] %vm59, %v1345
    %1348 = vst.msk [vmem:[#allocation2 + $0x18] sm:$0xff] %vm59, %v1346
    // Predicated region
    $region10: #{forward.1} parent=1 // pred_check
      _
    $region11: #{forward.1} parent=1 // pred_check_branch
      %1350 = sbr.rel (0) target = $region13
    $region12: #{forward.1} parent=1 // pred_region
      %s1352 = ssub.s32 512, 512
      %1353 = vsyncadd [#allocation3], %s1352
      %s1354 = sshll.u32 [#allocation2], 4
      %s1355 = int_to_ptr.vmem [resolvable:$true] %s1354
      %1360 = dma.vmem_to_hbm [thread:$0]  %s1355, 512, %s2, [#allocation3], 128, 128, 8
    $region13: #{forward.1} parent=1 // pred_fallthru
      _
    // Predicated region
    $region14: #{forward.1} parent=1 // pred_check
      _
    $region15: #{forward.1} parent=1 // pred_check_branch
      %1362 = sbr.rel (0) target = $region17
    $region16: #{forward.1} parent=1 // pred_region
      %1363 = dma.done [#allocation3], 512
    $region17: #{forward.1} parent=1 // pred_fallthru
      _
    %1364 = vsyncpa [#allocation3], 1

</llo_original>
